<compile_context>
chip_gen: v7x
topology: tpu7x:2x2x1
jax: 0.10.0
libtpu: 0.0.40
codegen_flags: <defaults>
</compile_context>

<pallas_src>
import functools
from typing import List, Sequence, Tuple

import jax
import jax.numpy as jnp
from jax.experimental import pallas as pl
from jax.experimental.pallas import tpu as pltpu


def _round_up(x: int, m: int) -> int:
    return ((x + m - 1) // m) * m


# ----------------------------------------------------------------------------
# Fused multi-layer, multi-head MLP kernel
# ----------------------------------------------------------------------------
def _fused_mlp_kernel(*refs, num_layers: int, sigmoid_output: bool):
    # refs = (x, w0, b0, w1, b1, ..., w_{L-1}, b_{L-1}, out)
    x_ref = refs[0]
    o_ref = refs[1 + 2 * num_layers]

    h = x_ref[...]                                  # (tn, d0) bf16 MXU feed
    for l in range(num_layers):                     # static -> fully unrolled
        w_ref = refs[1 + 2 * l]                     # (din_l, dout_l) bf16
        b_ref = refs[2 + 2 * l]                     # (1, dout_l) f32
        y = jnp.dot(h, w_ref[...], preferred_element_type=jnp.float32)
        y = y + b_ref[...]                          # f32 epilogue (broadcast)
        if l < num_layers - 1:
            h = jnp.maximum(y, 0.0).astype(jnp.bfloat16)   # ReLU -> next feed
        else:
            h = y
    if sigmoid_output:
        # sigmoid = 1/(1+exp(-y)); exp and approx reciprocal both hit the EUP.
        h = pl.reciprocal(1.0 + jnp.exp(-h), approx=True)
    o_ref[...] = h.astype(o_ref.dtype)


def _pick_row_tile(n: int, num_heads: int, row_tile: int) -> int:
    """Row tile: big tiles for large N; >=2 tiles for small single-head N so
    both v7x TensorCores get work; never larger than n unless n < 8."""
    if n <= 8:
        return n                                   # block == full row extent
    if num_heads == 1:
        tgt = _round_up(pl.cdiv(n, 2), 8)          # at least 2 row tiles
    else:
        tgt = _round_up(n, 8)                      # heads already parallelize
    tn = min(row_tile, tgt)
    tn = min(tn, (n // 8) * 8)                     # keep block rows <= n
    return max(tn, 8)


def fused_mlp(x: jax.Array,
              w_list: Sequence[jax.Array],
              b_list: Sequence[jax.Array],
              *,
              output_dim: int,
              sigmoid_output: bool,
              row_tile: int = 512) -> jax.Array:
    """Fused multi-layer (optionally multi-head) MLP in one pallas_call.

    x:       (H, N, Din)           any float dtype
    w_list:  per layer (H, din_pad, dout_pad) bf16, zero lane-padded
    b_list:  per layer (H, 1, dout_pad) f32, zero lane-padded
    returns: (H, N, output_dim) f32
    """
    num_layers = len(w_list)
    H, n, din = x.shape
    d0 = int(w_list[0].shape[1])
    d_last = int(w_list[-1].shape[2])
    assert d0 % 128 == 0 and d_last % 128 == 0
    for l in range(num_layers - 1):
        assert int(w_list[l].shape[2]) == int(w_list[l + 1].shape[1])

    # Lane-pad x to d0 (zeros!) fused with the bf16 cast; no row padding.
    x_in = x.astype(jnp.bfloat16)
    if din != d0:
        x_in = jnp.pad(x_in, ((0, 0), (0, 0), (0, d0 - din)))

    tn = _pick_row_tile(n, H, row_tile)
    grid = (H, pl.cdiv(n, tn))

    kernel = functools.partial(_fused_mlp_kernel, num_layers=num_layers,
                               sigmoid_output=sigmoid_output)

    # Advisory cost estimate (tight, per actual padded layer dims).
    flops = 2 * H * n * sum(int(w.shape[1]) * int(w.shape[2]) for w in w_list)
    transcendentals = H * n * d_last if sigmoid_output else 0
    bytes_accessed = (int(x_in.size) * 2
                      + sum(int(w.size) * 2 for w in w_list)
                      + sum(int(b.size) * 4 for b in b_list)
                      + H * n * d_last * 4)

    def _run(single_buffer_weights: bool) -> jax.Array:
        def _param_spec(arr):
            shape = (None, int(arr.shape[1]), int(arr.shape[2]))
            idx = lambda h, r: (h, 0, 0)           # constant across row tiles
            if single_buffer_weights:
                return pl.BlockSpec(shape, idx, pipeline_mode=pl.Buffered(1))
            return pl.BlockSpec(shape, idx)

        in_specs = [pl.BlockSpec((None, tn, d0), lambda h, r: (h, r, 0))]
        for w, b in zip(w_list, b_list):
            in_specs.append(_param_spec(w))
            in_specs.append(_param_spec(b))
        out_spec = pl.BlockSpec((None, tn, d_last), lambda h, r: (h, r, 0))

        # Explicit VMEM budget: double-buffered x/out tiles, resident params
        # (single- or double-buffered), a few f32 intermediates, plus slack.
        wt_buf = 1 if single_buffer_weights else 2
        param_bytes = (sum(int(w.shape[1]) * int(w.shape[2]) * 2 for w in w_list)
                       + sum(int(b.shape[2]) * 4 for b in b_list))
        max_d = max([d0] + [int(w.shape[2]) for w in w_list])
        tile_bytes = 2 * (tn * d0 * 2) + 2 * (tn * d_last * 4) + 3 * tn * max_d * 4
        budget = wt_buf * param_bytes + tile_bytes
        vmem_limit = min(max(int(budget * 1.5) + (4 << 20), 32 << 20), 64 << 20)

        operands = [x_in]
        for w, b in zip(w_list, b_list):
            operands.extend((w, b))

        return pl.pallas_call(
            kernel,
            out_shape=jax.ShapeDtypeStruct((H, n, d_last), jnp.float32),
            grid=grid,
            in_specs=in_specs,
            out_specs=out_spec,
            compiler_params=pltpu.CompilerParams(
                dimension_semantics=("parallel", "parallel"),
                vmem_limit_bytes=vmem_limit),
            cost_estimate=pl.CostEstimate(flops=flops,
                                          transcendentals=transcendentals,
                                          bytes_accessed=bytes_accessed),
        )(*operands)

    # Single-buffer resident weights only when their block never changes
    # (single head).  Guarded: fall back to default buffering if this jax
    # build rejects pipeline_mode / Buffered(1).
    want_single_buffer = (H == 1) and hasattr(pl, "Buffered")
    if want_single_buffer:
        try:
            out = _run(True)
        except Exception:
            out = _run(False)
    else:
        out = _run(False)

    # Consumers that can work on lane-padded outputs may skip this tiny slice.
    return out if d_last == output_dim else out[..., :output_dim]


# ----------------------------------------------------------------------------
# MLP module (mirrors the PyTorch reference)
# ----------------------------------------------------------------------------
class MLP:
    def __init__(self, input_dim: int, hidden_dim: int, output_dim: int,
                 num_layers: int, sigmoid_output: bool = False, *,
                 key: jax.Array, dtype=jnp.float32):
        self.num_layers = num_layers
        self.sigmoid_output = sigmoid_output
        self.output_dim = output_dim

        h = [hidden_dim] * (num_layers - 1)
        dims = list(zip([input_dim] + h, h + [output_dim]))

        # nn.Linear-style init: U(-1/sqrt(fan_in), +1/sqrt(fan_in)); f32 copy
        # kept for the pure-JAX reference.
        self.params: List[Tuple[jax.Array, jax.Array]] = []
        for n_in, n_out in dims:
            key, kw, kb = jax.random.split(key, 3)
            bound = 1.0 / (n_in ** 0.5)
            w = jax.random.uniform(kw, (n_in, n_out), dtype, -bound, bound)
            b = jax.random.uniform(kb, (n_out,), dtype, -bound, bound)
            self.params.append((w, b))

        # Tightly lane-padded, per-layer kernel operands (leading head dim = 1):
        #   w_pads[l]: (1, round_up(in,128), round_up(out,128)) bf16, zeros pad
        #   b_pads[l]: (1, 1, round_up(out,128)) f32, zeros pad
        self.w_pads: List[jax.Array] = []
        self.b_pads: List[jax.Array] = []
        for (n_in, n_out), (w, b) in zip(dims, self.params):
            dpi, dpo = _round_up(n_in, 128), _round_up(n_out, 128)
            w_pad = jnp.zeros((1, dpi, dpo), jnp.bfloat16)
            w_pad = w_pad.at[0, :n_in, :n_out].set(w.astype(jnp.bfloat16))
            b_pad = jnp.zeros((1, 1, dpo), jnp.float32)
            b_pad = b_pad.at[0, 0, :n_out].set(b.astype(jnp.float32))
            self.w_pads.append(w_pad)
            self.b_pads.append(b_pad)

    def __call__(self, x: jax.Array) -> jax.Array:
        lead = x.shape[:-1]
        x3d = x.reshape(1, -1, x.shape[-1])        # (H=1, N, Din)
        out = fused_mlp(x3d, self.w_pads, self.b_pads,
                        output_dim=self.output_dim,
                        sigmoid_output=self.sigmoid_output)
        return out.reshape(*lead, self.output_dim)


def hypernetwork_heads_forward(mlps: Sequence[MLP],
                               mask_tokens_out: jax.Array) -> jax.Array:
    """WebSAMDecoder hypernetwork heads: applies mlps[i] to
    mask_tokens_out[:, i, :] for all i in ONE fused pallas_call (head axis is a
    grid axis), mirroring

        hyper_in = torch.stack([mlp_i(mask_tokens_out[:, i, :]) for i], dim=1)
    """
    num_heads = len(mlps)
    b, nh, _ = mask_tokens_out.shape
    assert nh == num_heads
    m0 = mlps[0]
    # In a real decoder these stacked parameters would be built once at init.
    w_list = [jnp.concatenate([m.w_pads[l] for m in mlps], axis=0)
              for l in range(m0.num_layers)]
    b_list = [jnp.concatenate([m.b_pads[l] for m in mlps], axis=0)
              for l in range(m0.num_layers)]
    x_heads = jnp.transpose(mask_tokens_out, (1, 0, 2))       # (H, B, D)
    out = fused_mlp(x_heads, w_list, b_list,
                    output_dim=m0.output_dim,
                    sigmoid_output=m0.sigmoid_output)          # (H, B, out)
    return jnp.transpose(out, (1, 0, 2))                       # (B, H, out)


# ----------------------------------------------------------------------------
# Pure-JAX reference (mirrors the kernel's bf16-MXU-feed / f32-accum numerics)
# ----------------------------------------------------------------------------
def mlp_reference(x, params, num_layers, sigmoid_output):
    lead = x.shape[:-1]
    h = x.reshape(-1, x.shape[-1])
    for i, (w, b) in enumerate(params):
        y = jnp.dot(h.astype(jnp.bfloat16), w.astype(jnp.bfloat16),
                    preferred_element_type=jnp.float32) + b.astype(jnp.float32)
        h = jnp.maximum(y, 0.0) if i < num_layers - 1 else y
    if sigmoid_output:
        h = jax.nn.sigmoid(h)
    return h.reshape(*lead, h.shape[-1])


# TODO(synk): WebSAMDecoder's transformer, ConvTranspose2d upscaling stack,
# LayerNorm2d/GELU and the final hyper_in @ upscaled_embedding mask assembly
# are outside this kernel's scope; only the MLP hypernetwork head(s) are
# implemented here (same scope as the prior version).

if __name__ == "__main__":
    num_mask_tokens = 4                          # num_multimask_outputs + 1
    key = jax.random.PRNGKey(0)
    k_x, k_mlp, k_tok, *k_heads = jax.random.split(key, 3 + num_mask_tokens)

    # --- single fused MLP (sigmoid head) -------------------------------------
    batch, seq = 2, 8
    input_dim, hidden_dim, output_dim, num_layers = 32, 32, 16, 3
    x = jax.random.normal(k_x, (batch, seq, input_dim), dtype=jnp.float32)
    mlp = MLP(input_dim, hidden_dim, output_dim, num_layers,
              sigmoid_output=True, key=k_mlp)
    out = jax.block_until_ready(mlp(x))
    ref = mlp_reference(x, mlp.params, num_layers, sigmoid_output=True)
    assert out.shape == (batch, seq, output_dim), out.shape
    assert jnp.allclose(out, ref, atol=2e-2, rtol=2e-2), (
        f"single-head mismatch: max abs err {jnp.max(jnp.abs(out - ref))}")

    # --- WebSAMDecoder hypernetwork heads: 4 MLPs fused into one call --------
    tdim, bs = 32, 2                             # small stand-in transformer_dim
    heads = [MLP(tdim, tdim, tdim // 8, 3, sigmoid_output=False, key=k)
             for k in k_heads]
    mask_tokens_out = jax.random.normal(k_tok, (bs, num_mask_tokens, tdim),
                                        dtype=jnp.float32)
    hyper_in = jax.block_until_ready(
        hypernetwork_heads_forward(heads, mask_tokens_out))
    assert hyper_in.shape == (bs, num_mask_tokens, tdim // 8), hyper_in.shape
    for i, head in enumerate(heads):
        ref_i = mlp_reference(mask_tokens_out[:, i, :], head.params, 3, False)
        assert jnp.allclose(hyper_in[:, i, :], ref_i, atol=2e-2, rtol=2e-2), (
            f"head {i} mismatch: "
            f"max abs err {jnp.max(jnp.abs(hyper_in[:, i, :] - ref_i))}")

    print("KERNEL_OK")
</pallas_src>

<mosaic_0001>
module attributes {stable_mosaic.version = 11 : i64} {
  func.func @_fused_mlp_kernel(%arg0: i32, %arg1: i32, %arg2: memref<1x8x128xbf16, #tpu.memory_space<vmem>>, %arg3: memref<1x128x128xbf16, #tpu.memory_space<vmem>>, %arg4: memref<1x1x128xf32, #tpu.memory_space<vmem>>, %arg5: memref<1x128x128xbf16, #tpu.memory_space<vmem>>, %arg6: memref<1x1x128xf32, #tpu.memory_space<vmem>>, %arg7: memref<1x128x128xbf16, #tpu.memory_space<vmem>>, %arg8: memref<1x1x128xf32, #tpu.memory_space<vmem>>, %arg9: memref<1x8x128xf32, #tpu.memory_space<vmem>>) attributes {dimension_semantics = [#tpu.dimension_semantics<parallel>, #tpu.dimension_semantics<parallel>], iteration_bounds = array<i64: 1, 2>, scalar_prefetch = 0 : i64, scratch_operands = 0 : i64, tpu.core_type = #tpu.core_type<tc>, window_params = [{transform_indices = @transform_0, window_bounds = array<i64: 1, 8, 128>}, {pipeline_mode = #tpu.pipeline_mode<synchronous>, transform_indices = @transform_1, window_bounds = array<i64: 1, 128, 128>}, {pipeline_mode = #tpu.pipeline_mode<synchronous>, transform_indices = @transform_2, window_bounds = array<i64: 1, 1, 128>}, {pipeline_mode = #tpu.pipeline_mode<synchronous>, transform_indices = @transform_3, window_bounds = array<i64: 1, 128, 128>}, {pipeline_mode = #tpu.pipeline_mode<synchronous>, transform_indices = @transform_4, window_bounds = array<i64: 1, 1, 128>}, {pipeline_mode = #tpu.pipeline_mode<synchronous>, transform_indices = @transform_5, window_bounds = array<i64: 1, 128, 128>}, {pipeline_mode = #tpu.pipeline_mode<synchronous>, transform_indices = @transform_6, window_bounds = array<i64: 1, 1, 128>}, {transform_indices = @transform_7, window_bounds = array<i64: 1, 8, 128>}]} {
    %c0 = arith.constant 0 : index
    %c0_0 = arith.constant 0 : index
    %c0_1 = arith.constant 0 : index
    %0 = vector.load %arg2[%c0, %c0_0, %c0_1] : memref<1x8x128xbf16, #tpu.memory_space<vmem>>, vector<1x8x128xbf16>
    %1 = vector.shape_cast %0 : vector<1x8x128xbf16> to vector<8x128xbf16>
    %c0_2 = arith.constant 0 : index
    %c0_3 = arith.constant 0 : index
    %c0_4 = arith.constant 0 : index
    %2 = vector.load %arg3[%c0_2, %c0_3, %c0_4] : memref<1x128x128xbf16, #tpu.memory_space<vmem>>, vector<1x128x128xbf16>
    %3 = vector.shape_cast %2 : vector<1x128x128xbf16> to vector<128x128xbf16>
    %cst = arith.constant dense<0.000000e+00> : vector<8x128xf32>
    %4 = tpu.matmul %1, %3, %cst {dimension_numbers = #tpu.dot_dimension_numbers<[1], [0], [0], [1], [0, 0, 1, 1], [], []>} : vector<8x128xbf16>, vector<128x128xbf16>, vector<8x128xf32> -> vector<8x128xf32>
    %c0_5 = arith.constant 0 : index
    %c0_6 = arith.constant 0 : index
    %c0_7 = arith.constant 0 : index
    %5 = vector.load %arg4[%c0_5, %c0_6, %c0_7] : memref<1x1x128xf32, #tpu.memory_space<vmem>>, vector<1x1x128xf32>
    %6 = vector.shape_cast %5 : vector<1x1x128xf32> to vector<1x128xf32>
    %7 = vector.broadcast %6 : vector<1x128xf32> to vector<8x128xf32>
    %8 = arith.addf %4, %7 : vector<8x128xf32>
    %cst_8 = arith.constant 0.000000e+00 : f32
    %9 = vector.broadcast %cst_8 : f32 to vector<8x128xf32>
    %10 = arith.maximumf %8, %9 : vector<8x128xf32>
    %11 = arith.truncf %10 : vector<8x128xf32> to vector<8x128xbf16>
    %c0_9 = arith.constant 0 : index
    %c0_10 = arith.constant 0 : index
    %c0_11 = arith.constant 0 : index
    %12 = vector.load %arg5[%c0_9, %c0_10, %c0_11] : memref<1x128x128xbf16, #tpu.memory_space<vmem>>, vector<1x128x128xbf16>
    %13 = vector.shape_cast %12 : vector<1x128x128xbf16> to vector<128x128xbf16>
    %cst_12 = arith.constant dense<0.000000e+00> : vector<8x128xf32>
    %14 = tpu.matmul %11, %13, %cst_12 {dimension_numbers = #tpu.dot_dimension_numbers<[1], [0], [0], [1], [0, 0, 1, 1], [], []>} : vector<8x128xbf16>, vector<128x128xbf16>, vector<8x128xf32> -> vector<8x128xf32>
    %c0_13 = arith.constant 0 : index
    %c0_14 = arith.constant 0 : index
    %c0_15 = arith.constant 0 : index
    %15 = vector.load %arg6[%c0_13, %c0_14, %c0_15] : memref<1x1x128xf32, #tpu.memory_space<vmem>>, vector<1x1x128xf32>
    %16 = vector.shape_cast %15 : vector<1x1x128xf32> to vector<1x128xf32>
    %17 = vector.broadcast %16 : vector<1x128xf32> to vector<8x128xf32>
    %18 = arith.addf %14, %17 : vector<8x128xf32>
    %cst_16 = arith.constant 0.000000e+00 : f32
    %19 = vector.broadcast %cst_16 : f32 to vector<8x128xf32>
    %20 = arith.maximumf %18, %19 : vector<8x128xf32>
    %21 = arith.truncf %20 : vector<8x128xf32> to vector<8x128xbf16>
    %c0_17 = arith.constant 0 : index
    %c0_18 = arith.constant 0 : index
    %c0_19 = arith.constant 0 : index
    %22 = vector.load %arg7[%c0_17, %c0_18, %c0_19] : memref<1x128x128xbf16, #tpu.memory_space<vmem>>, vector<1x128x128xbf16>
    %23 = vector.shape_cast %22 : vector<1x128x128xbf16> to vector<128x128xbf16>
    %cst_20 = arith.constant dense<0.000000e+00> : vector<8x128xf32>
    %24 = tpu.matmul %21, %23, %cst_20 {dimension_numbers = #tpu.dot_dimension_numbers<[1], [0], [0], [1], [0, 0, 1, 1], [], []>} : vector<8x128xbf16>, vector<128x128xbf16>, vector<8x128xf32> -> vector<8x128xf32>
    %c0_21 = arith.constant 0 : index
    %c0_22 = arith.constant 0 : index
    %c0_23 = arith.constant 0 : index
    %25 = vector.load %arg8[%c0_21, %c0_22, %c0_23] : memref<1x1x128xf32, #tpu.memory_space<vmem>>, vector<1x1x128xf32>
    %26 = vector.shape_cast %25 : vector<1x1x128xf32> to vector<1x128xf32>
    %27 = vector.broadcast %26 : vector<1x128xf32> to vector<8x128xf32>
    %28 = arith.addf %24, %27 : vector<8x128xf32>
    %cst_24 = arith.constant 0.000000e+00 : f32
    %29 = vector.broadcast %cst_24 : f32 to vector<8x128xf32>
    %30 = arith.subf %29, %28 : vector<8x128xf32>
    %31 = math.exp %30 : vector<8x128xf32>
    %cst_25 = arith.constant 1.000000e+00 : f32
    %32 = vector.broadcast %cst_25 : f32 to vector<8x128xf32>
    %33 = arith.addf %32, %31 : vector<8x128xf32>
    %34 = tpu.reciprocal %33 {approx = true} : vector<8x128xf32> -> vector<8x128xf32>
    %c0_26 = arith.constant 0 : index
    %c0_27 = arith.constant 0 : index
    %c0_28 = arith.constant 0 : index
    %35 = vector.load %arg9[%c0_26, %c0_27, %c0_28] : memref<1x8x128xf32, #tpu.memory_space<vmem>>, vector<1x8x128xf32>
    %36 = vector.shape_cast %35 : vector<1x8x128xf32> to vector<8x128xf32>
    %37 = vector.shape_cast %34 : vector<8x128xf32> to vector<1x8x128xf32>
    tpu.vector_store %arg9[%c0_26, %c0_27, %c0_28], %37 {strides = array<i32>} : memref<1x8x128xf32, #tpu.memory_space<vmem>>, vector<1x8x128xf32>,
    return
  }
  func.func @transform_0(%arg0: i32, %arg1: i32) -> (i32, i32, i32) {
    %c0_i32 = arith.constant 0 : i32
    %c0_i32_0 = arith.constant 0 : i32
    return %arg0, %arg1, %c0_i32 : i32, i32, i32
  }
  func.func @transform_1(%arg0: i32, %arg1: i32) -> (i32, i32, i32) {
    %c0_i32 = arith.constant 0 : i32
    %c0_i32_0 = arith.constant 0 : i32
    %c0_i32_1 = arith.constant 0 : i32
    return %arg0, %c0_i32, %c0_i32_0 : i32, i32, i32
  }
  func.func @transform_2(%arg0: i32, %arg1: i32) -> (i32, i32, i32) {
    %c0_i32 = arith.constant 0 : i32
    %c0_i32_0 = arith.constant 0 : i32
    %c0_i32_1 = arith.constant 0 : i32
    return %arg0, %c0_i32, %c0_i32_0 : i32, i32, i32
  }
  func.func @transform_3(%arg0: i32, %arg1: i32) -> (i32, i32, i32) {
    %c0_i32 = arith.constant 0 : i32
    %c0_i32_0 = arith.constant 0 : i32
    %c0_i32_1 = arith.constant 0 : i32
    return %arg0, %c0_i32, %c0_i32_0 : i32, i32, i32
  }
  func.func @transform_4(%arg0: i32, %arg1: i32) -> (i32, i32, i32) {
    %c0_i32 = arith.constant 0 : i32
    %c0_i32_0 = arith.constant 0 : i32
    %c0_i32_1 = arith.constant 0 : i32
    return %arg0, %c0_i32, %c0_i32_0 : i32, i32, i32
  }
  func.func @transform_5(%arg0: i32, %arg1: i32) -> (i32, i32, i32) {
    %c0_i32 = arith.constant 0 : i32
    %c0_i32_0 = arith.constant 0 : i32
    %c0_i32_1 = arith.constant 0 : i32
    return %arg0, %c0_i32, %c0_i32_0 : i32, i32, i32
  }
  func.func @transform_6(%arg0: i32, %arg1: i32) -> (i32, i32, i32) {
    %c0_i32 = arith.constant 0 : i32
    %c0_i32_0 = arith.constant 0 : i32
    %c0_i32_1 = arith.constant 0 : i32
    return %arg0, %c0_i32, %c0_i32_0 : i32, i32, i32
  }
  func.func @transform_7(%arg0: i32, %arg1: i32) -> (i32, i32, i32) {
    %c0_i32 = arith.constant 0 : i32
    %c0_i32_0 = arith.constant 0 : i32
    return %arg0, %arg1, %c0_i32 : i32, i32, i32
  }
}

module attributes {stable_mosaic.version = 11 : i64} {
  func.func @_fused_mlp_kernel(%arg0: i32, %arg1: i32, %arg2: memref<1x8x128xbf16, #tpu.memory_space<vmem>>, %arg3: memref<1x128x128xbf16, #tpu.memory_space<vmem>>, %arg4: memref<1x1x128xf32, #tpu.memory_space<vmem>>, %arg5: memref<1x128x128xbf16, #tpu.memory_space<vmem>>, %arg6: memref<1x1x128xf32, #tpu.memory_space<vmem>>, %arg7: memref<1x128x128xbf16, #tpu.memory_space<vmem>>, %arg8: memref<1x1x128xf32, #tpu.memory_space<vmem>>, %arg9: memref<1x8x128xf32, #tpu.memory_space<vmem>>) attributes {dimension_semantics = [#tpu.dimension_semantics<parallel>, #tpu.dimension_semantics<parallel>], iteration_bounds = array<i64: 1, 2>, scalar_prefetch = 0 : i64, scratch_operands = 0 : i64, tpu.core_type = #tpu.core_type<tc>, window_params = [{transform_indices = @transform_0, window_bounds = array<i64: 1, 8, 128>}, {transform_indices = @transform_1, window_bounds = array<i64: 1, 128, 128>}, {transform_indices = @transform_2, window_bounds = array<i64: 1, 1, 128>}, {transform_indices = @transform_3, window_bounds = array<i64: 1, 128, 128>}, {transform_indices = @transform_4, window_bounds = array<i64: 1, 1, 128>}, {transform_indices = @transform_5, window_bounds = array<i64: 1, 128, 128>}, {transform_indices = @transform_6, window_bounds = array<i64: 1, 1, 128>}, {transform_indices = @transform_7, window_bounds = array<i64: 1, 8, 128>}]} {
    %c0 = arith.constant 0 : index
    %c0_0 = arith.constant 0 : index
    %c0_1 = arith.constant 0 : index
    %0 = vector.load %arg2[%c0, %c0_0, %c0_1] : memref<1x8x128xbf16, #tpu.memory_space<vmem>>, vector<1x8x128xbf16>
    %1 = vector.shape_cast %0 : vector<1x8x128xbf16> to vector<8x128xbf16>
    %c0_2 = arith.constant 0 : index
    %c0_3 = arith.constant 0 : index
    %c0_4 = arith.constant 0 : index
    %2 = vector.load %arg3[%c0_2, %c0_3, %c0_4] : memref<1x128x128xbf16, #tpu.memory_space<vmem>>, vector<1x128x128xbf16>
    %3 = vector.shape_cast %2 : vector<1x128x128xbf16> to vector<128x128xbf16>
    %cst = arith.constant dense<0.000000e+00> : vector<8x128xf32>
    %4 = tpu.matmul %1, %3, %cst {dimension_numbers = #tpu.dot_dimension_numbers<[1], [0], [0], [1], [0, 0, 1, 1], [], []>} : vector<8x128xbf16>, vector<128x128xbf16>, vector<8x128xf32> -> vector<8x128xf32>
    %c0_5 = arith.constant 0 : index
    %c0_6 = arith.constant 0 : index
    %c0_7 = arith.constant 0 : index
    %5 = vector.load %arg4[%c0_5, %c0_6, %c0_7] : memref<1x1x128xf32, #tpu.memory_space<vmem>>, vector<1x1x128xf32>
    %6 = vector.shape_cast %5 : vector<1x1x128xf32> to vector<1x128xf32>
    %7 = vector.broadcast %6 : vector<1x128xf32> to vector<8x128xf32>
    %8 = arith.addf %4, %7 : vector<8x128xf32>
    %cst_8 = arith.constant 0.000000e+00 : f32
    %9 = vector.broadcast %cst_8 : f32 to vector<8x128xf32>
    %10 = arith.maximumf %8, %9 : vector<8x128xf32>
    %11 = arith.truncf %10 : vector<8x128xf32> to vector<8x128xbf16>
    %c0_9 = arith.constant 0 : index
    %c0_10 = arith.constant 0 : index
    %c0_11 = arith.constant 0 : index
    %12 = vector.load %arg5[%c0_9, %c0_10, %c0_11] : memref<1x128x128xbf16, #tpu.memory_space<vmem>>, vector<1x128x128xbf16>
    %13 = vector.shape_cast %12 : vector<1x128x128xbf16> to vector<128x128xbf16>
    %cst_12 = arith.constant dense<0.000000e+00> : vector<8x128xf32>
    %14 = tpu.matmul %11, %13, %cst_12 {dimension_numbers = #tpu.dot_dimension_numbers<[1], [0], [0], [1], [0, 0, 1, 1], [], []>} : vector<8x128xbf16>, vector<128x128xbf16>, vector<8x128xf32> -> vector<8x128xf32>
    %c0_13 = arith.constant 0 : index
    %c0_14 = arith.constant 0 : index
    %c0_15 = arith.constant 0 : index
    %15 = vector.load %arg6[%c0_13, %c0_14, %c0_15] : memref<1x1x128xf32, #tpu.memory_space<vmem>>, vector<1x1x128xf32>
    %16 = vector.shape_cast %15 : vector<1x1x128xf32> to vector<1x128xf32>
    %17 = vector.broadcast %16 : vector<1x128xf32> to vector<8x128xf32>
    %18 = arith.addf %14, %17 : vector<8x128xf32>
    %cst_16 = arith.constant 0.000000e+00 : f32
    %19 = vector.broadcast %cst_16 : f32 to vector<8x128xf32>
    %20 = arith.maximumf %18, %19 : vector<8x128xf32>
    %21 = arith.truncf %20 : vector<8x128xf32> to vector<8x128xbf16>
    %c0_17 = arith.constant 0 : index
    %c0_18 = arith.constant 0 : index
    %c0_19 = arith.constant 0 : index
    %22 = vector.load %arg7[%c0_17, %c0_18, %c0_19] : memref<1x128x128xbf16, #tpu.memory_space<vmem>>, vector<1x128x128xbf16>
    %23 = vector.shape_cast %22 : vector<1x128x128xbf16> to vector<128x128xbf16>
    %cst_20 = arith.constant dense<0.000000e+00> : vector<8x128xf32>
    %24 = tpu.matmul %21, %23, %cst_20 {dimension_numbers = #tpu.dot_dimension_numbers<[1], [0], [0], [1], [0, 0, 1, 1], [], []>} : vector<8x128xbf16>, vector<128x128xbf16>, vector<8x128xf32> -> vector<8x128xf32>
    %c0_21 = arith.constant 0 : index
    %c0_22 = arith.constant 0 : index
    %c0_23 = arith.constant 0 : index
    %25 = vector.load %arg8[%c0_21, %c0_22, %c0_23] : memref<1x1x128xf32, #tpu.memory_space<vmem>>, vector<1x1x128xf32>
    %26 = vector.shape_cast %25 : vector<1x1x128xf32> to vector<1x128xf32>
    %27 = vector.broadcast %26 : vector<1x128xf32> to vector<8x128xf32>
    %28 = arith.addf %24, %27 : vector<8x128xf32>
    %cst_24 = arith.constant 0.000000e+00 : f32
    %29 = vector.broadcast %cst_24 : f32 to vector<8x128xf32>
    %30 = arith.subf %29, %28 : vector<8x128xf32>
    %31 = math.exp %30 : vector<8x128xf32>
    %cst_25 = arith.constant 1.000000e+00 : f32
    %32 = vector.broadcast %cst_25 : f32 to vector<8x128xf32>
    %33 = arith.addf %32, %31 : vector<8x128xf32>
    %34 = tpu.reciprocal %33 {approx = true} : vector<8x128xf32> -> vector<8x128xf32>
    %c0_26 = arith.constant 0 : index
    %c0_27 = arith.constant 0 : index
    %c0_28 = arith.constant 0 : index
    %35 = vector.load %arg9[%c0_26, %c0_27, %c0_28] : memref<1x8x128xf32, #tpu.memory_space<vmem>>, vector<1x8x128xf32>
    %36 = vector.shape_cast %35 : vector<1x8x128xf32> to vector<8x128xf32>
    %37 = vector.shape_cast %34 : vector<8x128xf32> to vector<1x8x128xf32>
    tpu.vector_store %arg9[%c0_26, %c0_27, %c0_28], %37 {strides = array<i32>} : memref<1x8x128xf32, #tpu.memory_space<vmem>>, vector<1x8x128xf32>,
    return
  }
  func.func @transform_0(%arg0: i32, %arg1: i32) -> (i32, i32, i32) {
    %c0_i32 = arith.constant 0 : i32
    %c0_i32_0 = arith.constant 0 : i32
    return %arg0, %arg1, %c0_i32 : i32, i32, i32
  }
  func.func @transform_1(%arg0: i32, %arg1: i32) -> (i32, i32, i32) {
    %c0_i32 = arith.constant 0 : i32
    %c0_i32_0 = arith.constant 0 : i32
    %c0_i32_1 = arith.constant 0 : i32
    return %arg0, %c0_i32, %c0_i32_0 : i32, i32, i32
  }
  func.func @transform_2(%arg0: i32, %arg1: i32) -> (i32, i32, i32) {
    %c0_i32 = arith.constant 0 : i32
    %c0_i32_0 = arith.constant 0 : i32
    %c0_i32_1 = arith.constant 0 : i32
    return %arg0, %c0_i32, %c0_i32_0 : i32, i32, i32
  }
  func.func @transform_3(%arg0: i32, %arg1: i32) -> (i32, i32, i32) {
    %c0_i32 = arith.constant 0 : i32
    %c0_i32_0 = arith.constant 0 : i32
    %c0_i32_1 = arith.constant 0 : i32
    return %arg0, %c0_i32, %c0_i32_0 : i32, i32, i32
  }
  func.func @transform_4(%arg0: i32, %arg1: i32) -> (i32, i32, i32) {
    %c0_i32 = arith.constant 0 : i32
    %c0_i32_0 = arith.constant 0 : i32
    %c0_i32_1 = arith.constant 0 : i32
    return %arg0, %c0_i32, %c0_i32_0 : i32, i32, i32
  }
  func.func @transform_5(%arg0: i32, %arg1: i32) -> (i32, i32, i32) {
    %c0_i32 = arith.constant 0 : i32
    %c0_i32_0 = arith.constant 0 : i32
    %c0_i32_1 = arith.constant 0 : i32
    return %arg0, %c0_i32, %c0_i32_0 : i32, i32, i32
  }
  func.func @transform_6(%arg0: i32, %arg1: i32) -> (i32, i32, i32) {
    %c0_i32 = arith.constant 0 : i32
    %c0_i32_0 = arith.constant 0 : i32
    %c0_i32_1 = arith.constant 0 : i32
    return %arg0, %c0_i32, %c0_i32_0 : i32, i32, i32
  }
  func.func @transform_7(%arg0: i32, %arg1: i32) -> (i32, i32, i32) {
    %c0_i32 = arith.constant 0 : i32
    %c0_i32_0 = arith.constant 0 : i32
    return %arg0, %arg1, %c0_i32 : i32, i32, i32
  }
}

</mosaic_0001>

<llo_original>
// kernel: tpu_custom_call.1
$region0: #{tpu_custom_call.1}
  #allocation0 [shape = 'u32[]', space=smem, size = 0x4, offset = 0x4, fixed_abs, tag = 'smem constant byte address 0x4 - core index']
  #allocation1 [shape = 'u32[144,128]{1,0:T(1,128)}', space=vmem, size = 0x12000, scoped, tag = 'internal scratch']
  %s0 = inlined_call_operand.hbm [shape: bf16[1,16,128], index: 0, kind: input, shape index: {}]
  %s1 = inlined_call_operand.hbm [shape: bf16[1,128,128], index: 1, kind: input, shape index: {}]
  %s2 = inlined_call_operand.vmem [shape: f32[1,1,128], index: 2, kind: input, shape index: {}]
  %s3 = inlined_call_operand.hbm [shape: bf16[1,128,128], index: 3, kind: input, shape index: {}]
  %s4 = inlined_call_operand.vmem [shape: f32[1,1,128], index: 4, kind: input, shape index: {}]
  %s5 = inlined_call_operand.hbm [shape: bf16[1,128,128], index: 5, kind: input, shape index: {}]
  %s6 = inlined_call_operand.vmem [shape: f32[1,1,128], index: 6, kind: input, shape index: {}]
  %s7 = inlined_call_operand.hbm [shape: f32[1,16,128], index: 7, kind: output, shape index: {}]
  %s8 = sld [smem:[#allocation0]]
  $region77: #{tpu_custom_call.1} parent=0
    _
  %s10 = ssub.s32 1, %s8
  %s11 = scalar_select 0, %s10, %s8
  $region1: #{tpu_custom_call.1} parent=0
    #allocation2 [shape = 'u8[4096]{0}', space=vmem, size = 0x1000, scoped, tag = 'input window, operand 0']
    #allocation3 [shape = 's32[2]{0}', space=sflag, size = 0x8, scoped, tag = 'scoped memory for tpu_custom_call.1']
    #allocation4 [shape = 's32[2]{0}', space=sflag, size = 0x8, scoped, tag = 'scoped memory for tpu_custom_call.1']
    #allocation5 [shape = 'u8[32768]{0}', space=vmem, size = 0x8000, scoped, tag = 'input window, operand 1, single buffered']
    #allocation6 [shape = 's32[1]{0}', space=sflag, size = 0x4, scoped, tag = 'scoped memory for tpu_custom_call.1']
    #allocation7 [shape = 'u8[32768]{0}', space=vmem, size = 0x8000, scoped, tag = 'input window, operand 3, single buffered']
    #allocation8 [shape = 'u8[32768]{0}', space=vmem, size = 0x8000, scoped, tag = 'input window, operand 5, single buffered']
    #allocation9 [shape = 's32[1]{0}', space=sflag, size = 0x4, scoped, tag = 'scoped memory for tpu_custom_call.1']
    #allocation10 [shape = 'u8[8192]{0}', space=vmem, size = 0x2000, scoped, tag = 'output window, operand 0']
    %12 = vsyncpa [#allocation3], 0
    %s13 = scalar_lea.sflag [#allocation3], 1
    %14 = vsyncpa %s13, 0
    %15 = vsyncpa [#allocation6], 0
    %16 = vsyncpa [#allocation9], 0
    %17 = vsyncpa [#allocation4], 0
    %s18 = scalar_lea.sflag [#allocation4], 1
    %19 = vsyncpa %s18, 0
    loop: start=0, step=1, limit=4
    $region2: #{tpu_custom_call.1} parent=1 // loop_pre_header
      _
    $region3: #{tpu_custom_call.1} parent=1 // loop_header
      %s21 = sphi 0, %s25
      %p22 = scmp.ge.s32.totalorder %s21, 4
      %s28 = sphi 0, %s40
      %s29 = sphi 0, %s36
      %s30 = sphi 0, %s28
      %s31 = sphi 0, %s29
      %s32 = sphi 0, %s30
      %s33 = sphi 0, %s31
      %s45 = sphi 0, %s47
      %s48 = sphi 0, %s45
      %s49 = sphi 0, %s48
      %s65 = sphi 0, %s49
      %s71 = sphi 0, %s73
      %s74 = sphi 0, %s71
      %s75 = sphi 0, %s74
      %s91 = sphi 0, %s75
      %s97 = sphi 0, %s99
      %s100 = sphi 0, %s97
      %s101 = sphi 0, %s100
      %s117 = sphi 0, %s101
      %s123 = sphi 0, %s125
      %s126 = sphi 0, %s123
      %s127 = sphi 0, %s126
      %s143 = sphi 0, %s127
      %s149 = sphi 0, %s151
      %s152 = sphi 0, %s149
      %s153 = sphi 0, %s152
      %s169 = sphi 0, %s153
      %s175 = sphi 0, %s177
      %s178 = sphi 0, %s175
      %s179 = sphi 0, %s178
      %s195 = sphi 0, %s179
      %s201 = sphi 0, %s203
      %s204 = sphi 0, %s201
      %s205 = sphi 0, %s204
      %s221 = sphi 0, %s205
      %s229 = sphi 0, %s231
      %s232 = sphi 0, %s229
      %s233 = sphi 0, %s232
      %s249 = sphi 0, %s233
    $region4: #{tpu_custom_call.1} parent=1 // loop_header_branch
      %24 = sbr.rel (%p22) target = $region8
    $region5: #{tpu_custom_call.1} parent=1 // loop_body
      %s26 = ssub.s32 %s21, 1
      %s27 = ssub.s32 %s21, 2
      %s34 = sadd.s32 1, %s29
      %p35 = scmp.ge.s32.totalorder %s34, 2
      %s36 = scalar_select %p35, 0, %s34
      %s37 = sadd.s32 1, %s28
      %s38 = scalar_select %p35, %s37, %s28
      %p39 = scmp.ge.s32.totalorder %s38, 1
      %s40 = scalar_select %p39, 0, %s38
      %s41 = ssub.s32 %s28, %s40
      %s42 = ssub.s32 %s29, %s36
      %s43 = sor.u32 %s41, %s42
      %p44 = scmp.eq.s32.totalorder %s43, 0
      %s46 = sadd.s32 %s45, 1
      %s47 = scalar_select %p44, %s45, %s46
      %p50 = pneg %p44
      %p51 = scmp.eq.s32.totalorder %s21, 1
      %p52 = por %p50, %p51
      %p53 = scmp.ne.s32.totalorder %s45, %s48
      %p54 = scmp.eq.s32.totalorder %s21, 0
      %p55 = por %p53, %p54
      %p56 = scmp.ne.s32.totalorder %s45, %s48
      %p57 = scmp.eq.s32.totalorder %s26, 1
      %p58 = por %p56, %p57
      %p59 = scmp.ne.s32.totalorder %s48, %s49
      %p60 = scmp.eq.s32.totalorder %s26, 0
      %p61 = por %p59, %p60
      %p62 = scmp.ne.s32.totalorder %s48, %s49
      %p63 = scmp.eq.s32.totalorder %s27, 1
      %p64 = por %p62, %p63
      %p66 = scmp.ne.s32.totalorder %s49, %s65
      %p67 = scmp.eq.s32.totalorder %s27, 0
      %p68 = por %p66, %p67
      %s69 = ssub.s32 %s28, %s40
      %p70 = scmp.eq.s32.totalorder %s69, 0
      %s72 = sadd.s32 %s71, 1
      %s73 = scalar_select %p70, %s71, %s72
      %p76 = pneg %p70
      %p77 = scmp.eq.s32.totalorder %s21, 1
      %p78 = por %p76, %p77
      %p79 = scmp.ne.s32.totalorder %s71, %s74
      %p80 = scmp.eq.s32.totalorder %s21, 0
      %p81 = por %p79, %p80
      %p82 = scmp.ne.s32.totalorder %s71, %s74
      %p83 = scmp.eq.s32.totalorder %s26, 1
      %p84 = por %p82, %p83
      %p85 = scmp.ne.s32.totalorder %s74, %s75
      %p86 = scmp.eq.s32.totalorder %s26, 0
      %p87 = por %p85, %p86
      %p88 = scmp.ne.s32.totalorder %s74, %s75
      %p89 = scmp.eq.s32.totalorder %s27, 1
      %p90 = por %p88, %p89
      %p92 = scmp.ne.s32.totalorder %s75, %s91
      %p93 = scmp.eq.s32.totalorder %s27, 0
      %p94 = por %p92, %p93
      %s95 = ssub.s32 %s28, %s40
      %p96 = scmp.eq.s32.totalorder %s95, 0
      %s98 = sadd.s32 %s97, 1
      %s99 = scalar_select %p96, %s97, %s98
      %p102 = pneg %p96
      %p103 = scmp.eq.s32.totalorder %s21, 1
      %p104 = por %p102, %p103
      %p105 = scmp.ne.s32.totalorder %s97, %s100
      %p106 = scmp.eq.s32.totalorder %s21, 0
      %p107 = por %p105, %p106
      %p108 = scmp.ne.s32.totalorder %s97, %s100
      %p109 = scmp.eq.s32.totalorder %s26, 1
      %p110 = por %p108, %p109
      %p111 = scmp.ne.s32.totalorder %s100, %s101
      %p112 = scmp.eq.s32.totalorder %s26, 0
      %p113 = por %p111, %p112
      %p114 = scmp.ne.s32.totalorder %s100, %s101
      %p115 = scmp.eq.s32.totalorder %s27, 1
      %p116 = por %p114, %p115
      %p118 = scmp.ne.s32.totalorder %s101, %s117
      %p119 = scmp.eq.s32.totalorder %s27, 0
      %p120 = por %p118, %p119
      %s121 = ssub.s32 %s28, %s40
      %p122 = scmp.eq.s32.totalorder %s121, 0
      %s124 = sadd.s32 %s123, 1
      %s125 = scalar_select %p122, %s123, %s124
      %p128 = pneg %p122
      %p129 = scmp.eq.s32.totalorder %s21, 1
      %p130 = por %p128, %p129
      %p131 = scmp.ne.s32.totalorder %s123, %s126
      %p132 = scmp.eq.s32.totalorder %s21, 0
      %p133 = por %p131, %p132
      %p134 = scmp.ne.s32.totalorder %s123, %s126
      %p135 = scmp.eq.s32.totalorder %s26, 1
      %p136 = por %p134, %p135
      %p137 = scmp.ne.s32.totalorder %s126, %s127
      %p138 = scmp.eq.s32.totalorder %s26, 0
      %p139 = por %p137, %p138
      %p140 = scmp.ne.s32.totalorder %s126, %s127
      %p141 = scmp.eq.s32.totalorder %s27, 1
      %p142 = por %p140, %p141
      %p144 = scmp.ne.s32.totalorder %s127, %s143
      %p145 = scmp.eq.s32.totalorder %s27, 0
      %p146 = por %p144, %p145
      %s147 = ssub.s32 %s28, %s40
      %p148 = scmp.eq.s32.totalorder %s147, 0
      %s150 = sadd.s32 %s149, 1
      %s151 = scalar_select %p148, %s149, %s150
      %p154 = pneg %p148
      %p155 = scmp.eq.s32.totalorder %s21, 1
      %p156 = por %p154, %p155
      %p157 = scmp.ne.s32.totalorder %s149, %s152
      %p158 = scmp.eq.s32.totalorder %s21, 0
      %p159 = por %p157, %p158
      %p160 = scmp.ne.s32.totalorder %s149, %s152
      %p161 = scmp.eq.s32.totalorder %s26, 1
      %p162 = por %p160, %p161
      %p163 = scmp.ne.s32.totalorder %s152, %s153
      %p164 = scmp.eq.s32.totalorder %s26, 0
      %p165 = por %p163, %p164
      %p166 = scmp.ne.s32.totalorder %s152, %s153
      %p167 = scmp.eq.s32.totalorder %s27, 1
      %p168 = por %p166, %p167
      %p170 = scmp.ne.s32.totalorder %s153, %s169
      %p171 = scmp.eq.s32.totalorder %s27, 0
      %p172 = por %p170, %p171
      %s173 = ssub.s32 %s28, %s40
      %p174 = scmp.eq.s32.totalorder %s173, 0
      %s176 = sadd.s32 %s175, 1
      %s177 = scalar_select %p174, %s175, %s176
      %p180 = pneg %p174
      %p181 = scmp.eq.s32.totalorder %s21, 1
      %p182 = por %p180, %p181
      %p183 = scmp.ne.s32.totalorder %s175, %s178
      %p184 = scmp.eq.s32.totalorder %s21, 0
      %p185 = por %p183, %p184
      %p186 = scmp.ne.s32.totalorder %s175, %s178
      %p187 = scmp.eq.s32.totalorder %s26, 1
      %p188 = por %p186, %p187
      %p189 = scmp.ne.s32.totalorder %s178, %s179
      %p190 = scmp.eq.s32.totalorder %s26, 0
      %p191 = por %p189, %p190
      %p192 = scmp.ne.s32.totalorder %s178, %s179
      %p193 = scmp.eq.s32.totalorder %s27, 1
      %p194 = por %p192, %p193
      %p196 = scmp.ne.s32.totalorder %s179, %s195
      %p197 = scmp.eq.s32.totalorder %s27, 0
      %p198 = por %p196, %p197
      %s199 = ssub.s32 %s28, %s40
      %p200 = scmp.eq.s32.totalorder %s199, 0
      %s202 = sadd.s32 %s201, 1
      %s203 = scalar_select %p200, %s201, %s202
      %p206 = pneg %p200
      %p207 = scmp.eq.s32.totalorder %s21, 1
      %p208 = por %p206, %p207
      %p209 = scmp.ne.s32.totalorder %s201, %s204
      %p210 = scmp.eq.s32.totalorder %s21, 0
      %p211 = por %p209, %p210
      %p212 = scmp.ne.s32.totalorder %s201, %s204
      %p213 = scmp.eq.s32.totalorder %s26, 1
      %p214 = por %p212, %p213
      %p215 = scmp.ne.s32.totalorder %s204, %s205
      %p216 = scmp.eq.s32.totalorder %s26, 0
      %p217 = por %p215, %p216
      %p218 = scmp.ne.s32.totalorder %s204, %s205
      %p219 = scmp.eq.s32.totalorder %s27, 1
      %p220 = por %p218, %p219
      %p222 = scmp.ne.s32.totalorder %s205, %s221
      %p223 = scmp.eq.s32.totalorder %s27, 0
      %p224 = por %p222, %p223
      %s225 = ssub.s32 %s28, %s40
      %s226 = ssub.s32 %s29, %s36
      %s227 = sor.u32 %s225, %s226
      %p228 = scmp.eq.s32.totalorder %s227, 0
      %s230 = sadd.s32 %s229, 1
      %s231 = scalar_select %p228, %s229, %s230
      %p234 = pneg %p228
      %p235 = scmp.eq.s32.totalorder %s21, 1
      %p236 = por %p234, %p235
      %p237 = scmp.ne.s32.totalorder %s229, %s232
      %p238 = scmp.eq.s32.totalorder %s21, 0
      %p239 = por %p237, %p238
      %p240 = scmp.ne.s32.totalorder %s229, %s232
      %p241 = scmp.eq.s32.totalorder %s26, 1
      %p242 = por %p240, %p241
      %p243 = scmp.ne.s32.totalorder %s232, %s233
      %p244 = scmp.eq.s32.totalorder %s26, 0
      %p245 = por %p243, %p244
      %p246 = scmp.ne.s32.totalorder %s232, %s233
      %p247 = scmp.eq.s32.totalorder %s27, 1
      %p248 = por %p246, %p247
      %p250 = scmp.ne.s32.totalorder %s233, %s249
      %p251 = scmp.eq.s32.totalorder %s27, 0
      %p252 = por %p250, %p251
      %p253 = scmp.le.s32.totalorder 1, %s21
      %p254 = scmp.lt.s32.totalorder %s21, 3
      %p255 = pnand %p253, %p254
      %p256 = pneg %p255
      // Predicated region
      $region9: #{tpu_custom_call.1} parent=5 // pred_check
        _
      $region10: #{tpu_custom_call.1} parent=5 // pred_check_branch
        %258 = sbr.rel (%p255) target = $region12
      $region11: #{tpu_custom_call.1} parent=5 // pred_region
        %s259 = ssub.s32 %s21, 1
        // Predicated region
        $region13: #{tpu_custom_call.1} parent=11 // pred_check
          %p260 = pneg %p87
        $region14: #{tpu_custom_call.1} parent=11 // pred_check_branch
          %262 = sbr.rel (%p260) target = $region16
        $region15: #{tpu_custom_call.1} parent=11 // pred_region
          %s264 = ssub.s32 1024, 1024
          %265 = vsyncadd [#allocation6], %s264
          %s266 = smul.addr %s30, 16
          %s267 = smul.addr %s266, 64
          %s268 = scalar_lea.hbm %s1, %s267
          %s269 = sshll.u32 [#allocation5], 4
          %s270 = int_to_ptr.vmem [resolvable:$true] %s269
          %275 = dma.hbm_to_vmem [thread:$0]  %s268, 1024, %s270, [#allocation6], 64, 64, 4
        $region16: #{tpu_custom_call.1} parent=11 // pred_fallthru
          _
        // Predicated region
        $region17: #{tpu_custom_call.1} parent=11 // pred_check
          %p276 = pneg %p113
        $region18: #{tpu_custom_call.1} parent=11 // pred_check_branch
          %278 = sbr.rel (%p276) target = $region20
        $region19: #{tpu_custom_call.1} parent=11 // pred_region
          %p279 = scmp.lt.s32.totalorder %s30, 0
          %s280 = scalar_select %p279, %s30, 0
          %s281 = scalar_lea.vmem %s2, %s280
        $region20: #{tpu_custom_call.1} parent=11 // pred_fallthru
          _
        // Predicated region
        $region21: #{tpu_custom_call.1} parent=11 // pred_check
          %p282 = pneg %p139
        $region22: #{tpu_custom_call.1} parent=11 // pred_check_branch
          %284 = sbr.rel (%p282) target = $region24
        $region23: #{tpu_custom_call.1} parent=11 // pred_region
          %s286 = ssub.s32 1024, 1024
          %287 = vsyncadd [#allocation6], %s286
          %s288 = smul.addr %s30, 16
          %s289 = smul.addr %s288, 64
          %s290 = scalar_lea.hbm %s3, %s289
          %s291 = sshll.u32 [#allocation7], 4
          %s292 = int_to_ptr.vmem [resolvable:$true] %s291
          %297 = dma.hbm_to_vmem [thread:$0]  %s290, 1024, %s292, [#allocation6], 64, 64, 4
        $region24: #{tpu_custom_call.1} parent=11 // pred_fallthru
          _
        // Predicated region
        $region25: #{tpu_custom_call.1} parent=11 // pred_check
          %p298 = pneg %p165
        $region26: #{tpu_custom_call.1} parent=11 // pred_check_branch
          %300 = sbr.rel (%p298) target = $region28
        $region27: #{tpu_custom_call.1} parent=11 // pred_region
          %p301 = scmp.lt.s32.totalorder %s30, 0
          %s302 = scalar_select %p301, %s30, 0
          %s303 = scalar_lea.vmem %s4, %s302
        $region28: #{tpu_custom_call.1} parent=11 // pred_fallthru
          _
        // Predicated region
        $region29: #{tpu_custom_call.1} parent=11 // pred_check
          %p304 = pneg %p191
        $region30: #{tpu_custom_call.1} parent=11 // pred_check_branch
          %306 = sbr.rel (%p304) target = $region32
        $region31: #{tpu_custom_call.1} parent=11 // pred_region
          %s308 = ssub.s32 1024, 1024
          %309 = vsyncadd [#allocation9], %s308
          %s310 = smul.addr %s30, 16
          %s311 = smul.addr %s310, 64
          %s312 = scalar_lea.hbm %s5, %s311
          %s313 = sshll.u32 [#allocation8], 4
          %s314 = int_to_ptr.vmem [resolvable:$true] %s313
          %319 = dma.hbm_to_vmem [thread:$0]  %s312, 1024, %s314, [#allocation9], 64, 64, 4
        $region32: #{tpu_custom_call.1} parent=11 // pred_fallthru
          _
        // Predicated region
        $region33: #{tpu_custom_call.1} parent=11 // pred_check
          %p320 = pneg %p217
        $region34: #{tpu_custom_call.1} parent=11 // pred_check_branch
          %322 = sbr.rel (%p320) target = $region36
        $region35: #{tpu_custom_call.1} parent=11 // pred_region
          %p323 = scmp.lt.s32.totalorder %s30, 0
          %s324 = scalar_select %p323, %s30, 0
          %s325 = scalar_lea.vmem %s6, %s324
        $region36: #{tpu_custom_call.1} parent=11 // pred_fallthru
          _
      $region12: #{tpu_custom_call.1} parent=5 // pred_fallthru
        _
      %p326 = scmp.lt.s32.totalorder %s21, 2
      // Predicated region
      $region37: #{tpu_custom_call.1} parent=5 // pred_check
        %p327 = pneg %p326
      $region38: #{tpu_custom_call.1} parent=5 // pred_check_branch
        %329 = sbr.rel (%p327) target = $region40
      $region39: #{tpu_custom_call.1} parent=5 // pred_region
        // Predicated region
        $region41: #{tpu_custom_call.1} parent=39 // pred_check
          %p330 = pneg %p55
        $region42: #{tpu_custom_call.1} parent=39 // pred_check_branch
          %332 = sbr.rel (%p330) target = $region44
        $region43: #{tpu_custom_call.1} parent=39 // pred_region
          %s333 = sand.u32 %s45, 1
          %s334 = scalar_lea.sflag [#allocation3], %s333
          %s335 = sand.u32 %s45, 1
          %s336 = smul.addr %s335, 4
          %s337 = scalar_lea.vmem [#allocation2], %s336
          %s339 = ssub.s32 64, 64
          %340 = vsyncadd %s334, %s339
          %s341 = smul.addr %s28, 2
          %s342 = sadd.s32 %s29, %s341
          %s343 = smul.addr %s342, 64
          %s344 = scalar_lea.hbm %s0, %s343
          %s346 = sshll.u32 %s337, 4
          %s347 = int_to_ptr.vmem [resolvable:$true] %s346
          %349 = dma.hbm_to_vmem [thread:$0]  %s344, 64, %s347, %s334
        $region44: #{tpu_custom_call.1} parent=39 // pred_fallthru
          _
      $region40: #{tpu_custom_call.1} parent=5 // pred_fallthru
        _
      %p350 = scmp.le.s32.totalorder 1, %s21
      %p351 = scmp.lt.s32.totalorder %s21, 3
      %p352 = pnand %p350, %p351
      %p353 = pneg %p352
      // Predicated region
      $region45: #{tpu_custom_call.1} parent=5 // pred_check
        _
      $region46: #{tpu_custom_call.1} parent=5 // pred_check_branch
        %355 = sbr.rel (%p352) target = $region48
      $region47: #{tpu_custom_call.1} parent=5 // pred_region
        %s356 = ssub.s32 %s21, 1
        %s357 = sand.u32 %s48, 1
        %s358 = scalar_lea.sflag [#allocation3], %s357
        %s359 = sand.u32 %s48, 1
        %s360 = smul.addr %s359, 4
        %s361 = scalar_lea.vmem [#allocation2], %s360
        // Predicated region
        $region49: #{tpu_custom_call.1} parent=47 // pred_check
          %p362 = pneg %p61
        $region50: #{tpu_custom_call.1} parent=47 // pred_check_branch
          %364 = sbr.rel (%p362) target = $region52
        $region51: #{tpu_custom_call.1} parent=47 // pred_region
          %365 = dma.done %s358, 64
        $region52: #{tpu_custom_call.1} parent=47 // pred_fallthru
          _
        // Predicated region
        $region53: #{tpu_custom_call.1} parent=47 // pred_check
          %p366 = pneg %p87
        $region54: #{tpu_custom_call.1} parent=47 // pred_check_branch
          %368 = sbr.rel (%p366) target = $region56
        $region55: #{tpu_custom_call.1} parent=47 // pred_region
          %369 = dma.done [#allocation6], 1024
        $region56: #{tpu_custom_call.1} parent=47 // pred_fallthru
          _
        // Predicated region
        $region57: #{tpu_custom_call.1} parent=47 // pred_check
          %p370 = pneg %p139
        $region58: #{tpu_custom_call.1} parent=47 // pred_check_branch
          %372 = sbr.rel (%p370) target = $region60
        $region59: #{tpu_custom_call.1} parent=47 // pred_region
          %373 = dma.done [#allocation6], 1024
        $region60: #{tpu_custom_call.1} parent=47 // pred_fallthru
          _
        // Predicated region
        $region61: #{tpu_custom_call.1} parent=47 // pred_check
          %p374 = pneg %p191
        $region62: #{tpu_custom_call.1} parent=47 // pred_check_branch
          %376 = sbr.rel (%p374) target = $region64
        $region63: #{tpu_custom_call.1} parent=47 // pred_region
          %377 = dma.done [#allocation9], 1024
        $region64: #{tpu_custom_call.1} parent=47 // pred_fallthru
          _
        %s378 = sand.u32 %s48, 1
        %s379 = scalar_lea.sflag [#allocation3], %s378
        %s380 = sand.u32 %s48, 1
        %s381 = smul.addr %s380, 4
        %s382 = scalar_lea.vmem [#allocation2], %s381
        %p383 = pneg %p61
        %p384 = pneg %p58
        %p385 = pneg %p87
        %p386 = pneg %p84
        %p387 = scmp.lt.s32.totalorder %s30, 0
        %s388 = scalar_select %p387, %s30, 0
        %s389 = scalar_lea.vmem %s2, %s388
        %p390 = pneg %p113
        %p391 = pneg %p110
        %p392 = pneg %p139
        %p393 = pneg %p136
        %p394 = scmp.lt.s32.totalorder %s30, 0
        %s395 = scalar_select %p394, %s30, 0
        %s396 = scalar_lea.vmem %s4, %s395
        %p397 = pneg %p165
        %p398 = pneg %p162
        %p399 = pneg %p191
        %p400 = pneg %p188
        %p401 = scmp.lt.s32.totalorder %s30, 0
        %s402 = scalar_select %p401, %s30, 0
        %s403 = scalar_lea.vmem %s6, %s402
        %p404 = pneg %p217
        %p405 = pneg %p214
        %p406 = pneg %p245
        %p407 = pneg %p242
        %s408 = sand.u32 %s232, 1
        %s409 = scalar_lea.sflag [#allocation4], %s408
        %s410 = sand.u32 %s232, 1
        %s411 = smul.addr %s410, 8
        %s412 = scalar_lea.vmem [#allocation10], %s411
        %p413 = scmp.lt.s32.totalorder %s30, 0
        %s414 = scalar_select %p413, %s30, 0
        %s415 = scalar_lea.vmem %s2, %s414
        %p416 = scmp.lt.s32.totalorder %s30, 0
        %s417 = scalar_select %p416, %s30, 0
        %s418 = scalar_lea.vmem %s4, %s417
        %p419 = scmp.lt.s32.totalorder %s30, 0
        %s420 = scalar_select %p419, %s30, 0
        %s421 = scalar_lea.vmem %s6, %s420
        %v423 = vld [vmem:[%s361] sm:$0xf]
        %v424 = vld [vmem:[#allocation5] sm:$0xf]
        %v425 = vld [vmem:[#allocation5 + $0x4] sm:$0xf]
        %v426 = vld [vmem:[#allocation5 + $0x8] sm:$0xf]
        %v427 = vld [vmem:[#allocation5 + $0xc] sm:$0xf]
        %v428 = vld [vmem:[#allocation5 + $0x10] sm:$0xf]
        %v429 = vld [vmem:[#allocation5 + $0x14] sm:$0xf]
        %v430 = vld [vmem:[#allocation5 + $0x18] sm:$0xf]
        %v431 = vld [vmem:[#allocation5 + $0x1c] sm:$0xf]
        %v432 = vld [vmem:[#allocation5 + $0x20] sm:$0xf]
        %v433 = vld [vmem:[#allocation5 + $0x24] sm:$0xf]
        %v434 = vld [vmem:[#allocation5 + $0x28] sm:$0xf]
        %v435 = vld [vmem:[#allocation5 + $0x2c] sm:$0xf]
        %v436 = vld [vmem:[#allocation5 + $0x30] sm:$0xf]
        %v437 = vld [vmem:[#allocation5 + $0x34] sm:$0xf]
        %v438 = vld [vmem:[#allocation5 + $0x38] sm:$0xf]
        %v439 = vld [vmem:[#allocation5 + $0x3c] sm:$0xf]
        %v440 = vld [vmem:[%s415] sm:$0x1]
        %v442 = vlaneseq
        %v443 = vshrl.u32 %v442, 7
        %v444 = vsub.s32 0, %v443
        %v445 = vrot.slane %v440, %v444
        %v463 = vunpack.c.l.b16 %v424
        %v464 = vunpack.c.l.b16 %v425
        %v465 = vunpack.c.l.b16 %v426
        %v466 = vunpack.c.l.b16 %v427
        %v467 = vunpack.c.l.b16 %v428
        %v468 = vunpack.c.l.b16 %v429
        %v469 = vunpack.c.l.b16 %v430
        %v470 = vunpack.c.l.b16 %v431
        %v471 = vunpack.c.l.b16 %v432
        %v472 = vunpack.c.l.b16 %v433
        %v473 = vunpack.c.l.b16 %v434
        %v474 = vunpack.c.l.b16 %v435
        %v475 = vunpack.c.l.b16 %v436
        %v476 = vunpack.c.l.b16 %v437
        %v477 = vunpack.c.l.b16 %v438
        %v478 = vunpack.c.l.b16 %v439
        %v479 = vpack.c.b16 %v464, %v463
        %v480 = vpack.c.b16 %v466, %v465
        %v481 = vpack.c.b16 %v468, %v467
        %v482 = vpack.c.b16 %v470, %v469
        %v483 = vpack.c.b16 %v472, %v471
        %v484 = vpack.c.b16 %v474, %v473
        %v485 = vpack.c.b16 %v476, %v475
        %v486 = vpack.c.b16 %v478, %v477
        %495 = vmatprep.subr.bf16.mxu0 0
        %496 = vmatpush1.bf16.msra.mxu0 %v479
        %497 = vmatprep.subr.bf16.mxu0 0
        %498 = vmatpush1.bf16.msra.mxu0 %v480
        %499 = vmatprep.subr.bf16.mxu0 0
        %500 = vmatpush1.bf16.msra.mxu0 %v481
        %501 = vmatprep.subr.bf16.mxu0 0
        %502 = vmatpush1.bf16.msra.mxu0 %v482
        %503 = vmatprep.subr.bf16.mxu0 0
        %504 = vmatpush1.bf16.msra.mxu0 %v483
        %505 = vmatprep.subr.bf16.mxu0 0
        %506 = vmatpush1.bf16.msra.mxu0 %v484
        %507 = vmatprep.subr.bf16.mxu0 0
        %508 = vmatpush1.bf16.msra.mxu0 %v485
        %509 = vmatprep.subr.bf16.mxu0 0
        %510 = vmatpush1.bf16.msra.mxu0 %v486
        %511 = vmatprep.subr.bf16.mxu0 0
        %512 = vmatpush1.bf16.msra.mxu0 0
        %513 = vmatprep.subr.bf16.mxu0 0
        %514 = vmatpush1.bf16.msra.mxu0 0
        %515 = vmatprep.subr.bf16.mxu0 0
        %516 = vmatpush1.bf16.msra.mxu0 0
        %517 = vmatprep.subr.bf16.mxu0 0
        %518 = vmatpush1.bf16.msra.mxu0 0
        %519 = vmatprep.subr.bf16.mxu0 0
        %520 = vmatpush1.bf16.msra.mxu0 0
        %521 = vmatprep.subr.bf16.mxu0 0
        %522 = vmatpush1.bf16.msra.mxu0 0
        %523 = vmatprep.subr.bf16.mxu0 0
        %524 = vmatpush1.bf16.msra.mxu0 0
        %525 = vmatprep.subr.bf16.mxu0 0
        %526 = vmatpush1.bf16.msra.mxu0 0
        %527 = vmatprep.mubr.bf16.mxu0 0
        %528 = vmatmul.mubr.bf16.gmra.mrb[0].mxu0 %v423
        %v529 = vpop.f32.mrb[0].mxu0
        %v530 = vadd.f32 %v445, %v529
        %v531 = vpop.f32.mrb[0].mxu0
        %v532 = vpop.f32.mrb[0].mxu0
        %v533 = vpop.f32.mrb[0].mxu0
        %534 = vdwg.mxu0
        %v535 = vmax.f32 %v530, 0.0
        %v536 = vpack.c.bf16 %v535, %v535
        %v537 = vld [vmem:[#allocation7] sm:$0xf]
        %v538 = vld [vmem:[#allocation7 + $0x4] sm:$0xf]
        %v539 = vld [vmem:[#allocation7 + $0x8] sm:$0xf]
        %v540 = vld [vmem:[#allocation7 + $0xc] sm:$0xf]
        %v541 = vld [vmem:[#allocation7 + $0x10] sm:$0xf]
        %v542 = vld [vmem:[#allocation7 + $0x14] sm:$0xf]
        %v543 = vld [vmem:[#allocation7 + $0x18] sm:$0xf]
        %v544 = vld [vmem:[#allocation7 + $0x1c] sm:$0xf]
        %v545 = vld [vmem:[#allocation7 + $0x20] sm:$0xf]
        %v546 = vld [vmem:[#allocation7 + $0x24] sm:$0xf]
        %v547 = vld [vmem:[#allocation7 + $0x28] sm:$0xf]
        %v548 = vld [vmem:[#allocation7 + $0x2c] sm:$0xf]
        %v549 = vld [vmem:[#allocation7 + $0x30] sm:$0xf]
        %v550 = vld [vmem:[#allocation7 + $0x34] sm:$0xf]
        %v551 = vld [vmem:[#allocation7 + $0x38] sm:$0xf]
        %v552 = vld [vmem:[#allocation7 + $0x3c] sm:$0xf]
        %v553 = vld [vmem:[%s418] sm:$0x1]
        %v555 = vlaneseq
        %v556 = vshrl.u32 %v555, 7
        %v557 = vsub.s32 0, %v556
        %v558 = vrot.slane %v553, %v557
        %v576 = vunpack.c.l.b16 %v537
        %v577 = vunpack.c.l.b16 %v538
        %v578 = vunpack.c.l.b16 %v539
        %v579 = vunpack.c.l.b16 %v540
        %v580 = vunpack.c.l.b16 %v541
        %v581 = vunpack.c.l.b16 %v542
        %v582 = vunpack.c.l.b16 %v543
        %v583 = vunpack.c.l.b16 %v544
        %v584 = vunpack.c.l.b16 %v545
        %v585 = vunpack.c.l.b16 %v546
        %v586 = vunpack.c.l.b16 %v547
        %v587 = vunpack.c.l.b16 %v548
        %v588 = vunpack.c.l.b16 %v549
        %v589 = vunpack.c.l.b16 %v550
        %v590 = vunpack.c.l.b16 %v551
        %v591 = vunpack.c.l.b16 %v552
        %v592 = vpack.c.b16 %v577, %v576
        %v593 = vpack.c.b16 %v579, %v578
        %v594 = vpack.c.b16 %v581, %v580
        %v595 = vpack.c.b16 %v583, %v582
        %v596 = vpack.c.b16 %v585, %v584
        %v597 = vpack.c.b16 %v587, %v586
        %v598 = vpack.c.b16 %v589, %v588
        %v599 = vpack.c.b16 %v591, %v590
        %608 = vmatprep.subr.bf16.mxu0 0
        %609 = vmatpush1.bf16.msra.mxu0 %v592
        %610 = vmatprep.subr.bf16.mxu0 0
        %611 = vmatpush1.bf16.msra.mxu0 %v593
        %612 = vmatprep.subr.bf16.mxu0 0
        %613 = vmatpush1.bf16.msra.mxu0 %v594
        %614 = vmatprep.subr.bf16.mxu0 0
        %615 = vmatpush1.bf16.msra.mxu0 %v595
        %616 = vmatprep.subr.bf16.mxu0 0
        %617 = vmatpush1.bf16.msra.mxu0 %v596
        %618 = vmatprep.subr.bf16.mxu0 0
        %619 = vmatpush1.bf16.msra.mxu0 %v597
        %620 = vmatprep.subr.bf16.mxu0 0
        %621 = vmatpush1.bf16.msra.mxu0 %v598
        %622 = vmatprep.subr.bf16.mxu0 0
        %623 = vmatpush1.bf16.msra.mxu0 %v599
        %624 = vmatprep.subr.bf16.mxu0 0
        %625 = vmatpush1.bf16.msra.mxu0 0
        %626 = vmatprep.subr.bf16.mxu0 0
        %627 = vmatpush1.bf16.msra.mxu0 0
        %628 = vmatprep.subr.bf16.mxu0 0
        %629 = vmatpush1.bf16.msra.mxu0 0
        %630 = vmatprep.subr.bf16.mxu0 0
        %631 = vmatpush1.bf16.msra.mxu0 0
        %632 = vmatprep.subr.bf16.mxu0 0
        %633 = vmatpush1.bf16.msra.mxu0 0
        %634 = vmatprep.subr.bf16.mxu0 0
        %635 = vmatpush1.bf16.msra.mxu0 0
        %636 = vmatprep.subr.bf16.mxu0 0
        %637 = vmatpush1.bf16.msra.mxu0 0
        %638 = vmatprep.subr.bf16.mxu0 0
        %639 = vmatpush1.bf16.msra.mxu0 0
        %640 = vmatprep.mubr.bf16.mxu0 0
        %641 = vmatmul.mubr.bf16.gmra.mrb[0].mxu0 %v536
        %v642 = vpop.f32.mrb[0].mxu0
        %v643 = vadd.f32 %v558, %v642
        %v644 = vpop.f32.mrb[0].mxu0
        %v645 = vpop.f32.mrb[0].mxu0
        %v646 = vpop.f32.mrb[0].mxu0
        %647 = vdwg.mxu0
        %v648 = vmax.f32 %v643, 0.0
        %v649 = vpack.c.bf16 %v648, %v648
        %v650 = vld [vmem:[#allocation8] sm:$0xf]
        %v651 = vld [vmem:[#allocation8 + $0x4] sm:$0xf]
        %v652 = vld [vmem:[#allocation8 + $0x8] sm:$0xf]
        %v653 = vld [vmem:[#allocation8 + $0xc] sm:$0xf]
        %v654 = vld [vmem:[#allocation8 + $0x10] sm:$0xf]
        %v655 = vld [vmem:[#allocation8 + $0x14] sm:$0xf]
        %v656 = vld [vmem:[#allocation8 + $0x18] sm:$0xf]
        %v657 = vld [vmem:[#allocation8 + $0x1c] sm:$0xf]
        %v658 = vld [vmem:[#allocation8 + $0x20] sm:$0xf]
        %v659 = vld [vmem:[#allocation8 + $0x24] sm:$0xf]
        %v660 = vld [vmem:[#allocation8 + $0x28] sm:$0xf]
        %v661 = vld [vmem:[#allocation8 + $0x2c] sm:$0xf]
        %v662 = vld [vmem:[#allocation8 + $0x30] sm:$0xf]
        %v663 = vld [vmem:[#allocation8 + $0x34] sm:$0xf]
        %v664 = vld [vmem:[#allocation8 + $0x38] sm:$0xf]
        %v665 = vld [vmem:[#allocation8 + $0x3c] sm:$0xf]
        %v666 = vld [vmem:[%s421] sm:$0x1]
        %v668 = vlaneseq
        %v669 = vshrl.u32 %v668, 7
        %v670 = vsub.s32 0, %v669
        %v671 = vrot.slane %v666, %v670
        %v689 = vunpack.c.l.b16 %v650
        %v690 = vunpack.c.l.b16 %v651
        %v691 = vunpack.c.l.b16 %v652
        %v692 = vunpack.c.l.b16 %v653
        %v693 = vunpack.c.l.b16 %v654
        %v694 = vunpack.c.l.b16 %v655
        %v695 = vunpack.c.l.b16 %v656
        %v696 = vunpack.c.l.b16 %v657
        %v697 = vunpack.c.l.b16 %v658
        %v698 = vunpack.c.l.b16 %v659
        %v699 = vunpack.c.l.b16 %v660
        %v700 = vunpack.c.l.b16 %v661
        %v701 = vunpack.c.l.b16 %v662
        %v702 = vunpack.c.l.b16 %v663
        %v703 = vunpack.c.l.b16 %v664
        %v704 = vunpack.c.l.b16 %v665
        %v705 = vpack.c.b16 %v690, %v689
        %v706 = vpack.c.b16 %v692, %v691
        %v707 = vpack.c.b16 %v694, %v693
        %v708 = vpack.c.b16 %v696, %v695
        %v709 = vpack.c.b16 %v698, %v697
        %v710 = vpack.c.b16 %v700, %v699
        %v711 = vpack.c.b16 %v702, %v701
        %v712 = vpack.c.b16 %v704, %v703
        %721 = vmatprep.subr.bf16.mxu0 0
        %722 = vmatpush1.bf16.msra.mxu0 %v705
        %723 = vmatprep.subr.bf16.mxu0 0
        %724 = vmatpush1.bf16.msra.mxu0 %v706
        %725 = vmatprep.subr.bf16.mxu0 0
        %726 = vmatpush1.bf16.msra.mxu0 %v707
        %727 = vmatprep.subr.bf16.mxu0 0
        %728 = vmatpush1.bf16.msra.mxu0 %v708
        %729 = vmatprep.subr.bf16.mxu0 0
        %730 = vmatpush1.bf16.msra.mxu0 %v709
        %731 = vmatprep.subr.bf16.mxu0 0
        %732 = vmatpush1.bf16.msra.mxu0 %v710
        %733 = vmatprep.subr.bf16.mxu0 0
        %734 = vmatpush1.bf16.msra.mxu0 %v711
        %735 = vmatprep.subr.bf16.mxu0 0
        %736 = vmatpush1.bf16.msra.mxu0 %v712
        %737 = vmatprep.subr.bf16.mxu0 0
        %738 = vmatpush1.bf16.msra.mxu0 0
        %739 = vmatprep.subr.bf16.mxu0 0
        %740 = vmatpush1.bf16.msra.mxu0 0
        %741 = vmatprep.subr.bf16.mxu0 0
        %742 = vmatpush1.bf16.msra.mxu0 0
        %743 = vmatprep.subr.bf16.mxu0 0
        %744 = vmatpush1.bf16.msra.mxu0 0
        %745 = vmatprep.subr.bf16.mxu0 0
        %746 = vmatpush1.bf16.msra.mxu0 0
        %747 = vmatprep.subr.bf16.mxu0 0
        %748 = vmatpush1.bf16.msra.mxu0 0
        %749 = vmatprep.subr.bf16.mxu0 0
        %750 = vmatpush1.bf16.msra.mxu0 0
        %751 = vmatprep.subr.bf16.mxu0 0
        %752 = vmatpush1.bf16.msra.mxu0 0
        %753 = vmatprep.mubr.bf16.mxu0 0
        %754 = vmatmul.mubr.bf16.gmra.mrb[0].mxu0 %v649
        %v755 = vpop.f32.mrb[0].mxu0
        %v756 = vadd.f32 %v671, %v755
        %v757 = vpop.f32.mrb[0].mxu0
        %v758 = vpop.f32.mrb[0].mxu0
        %v759 = vpop.f32.mrb[0].mxu0
        %760 = vdwg.mxu0
        %v761 = vsub.f32 0.0, %v756
        %v762 = vmul.f32 %v761, 1.442695
        %v763 = vpow.pop %v762
        %v764 = vadd.f32 %v763, 1.0
        %v765 = vrcp.pop %v764
        %766 = vst [vmem:[%s412] sm:$0xff] %v765
        %s767 = sand.u32 %s232, 1
        %s768 = scalar_lea.sflag [#allocation4], %s767
        %s769 = sand.u32 %s232, 1
        %s770 = smul.addr %s769, 8
        %s771 = scalar_lea.vmem [#allocation10], %s770
        // Predicated region
        $region65: #{tpu_custom_call.1} parent=47 // pred_check
          %p772 = pneg %p242
        $region66: #{tpu_custom_call.1} parent=47 // pred_check_branch
          %774 = sbr.rel (%p772) target = $region68
        $region67: #{tpu_custom_call.1} parent=47 // pred_region
          %s776 = ssub.s32 128, 128
          %777 = vsyncadd %s768, %s776
          %s778 = smul.addr %s30, 2
          %s779 = sadd.s32 %s31, %s778
          %s780 = smul.addr %s779, 128
          %s781 = scalar_lea.hbm %s7, %s780
          %s783 = sshll.u32 %s771, 4
          %s784 = int_to_ptr.vmem [resolvable:$true] %s783
          %786 = dma.vmem_to_hbm [thread:$0]  %s784, 128, %s781, %s768
        $region68: #{tpu_custom_call.1} parent=47 // pred_fallthru
          _
      $region48: #{tpu_custom_call.1} parent=5 // pred_fallthru
        _
      %p787 = scmp.le.s32.totalorder 2, %s21
      // Predicated region
      $region69: #{tpu_custom_call.1} parent=5 // pred_check
        %p788 = pneg %p787
      $region70: #{tpu_custom_call.1} parent=5 // pred_check_branch
        %790 = sbr.rel (%p788) target = $region72
      $region71: #{tpu_custom_call.1} parent=5 // pred_region
        %s791 = ssub.s32 %s21, 2
        // Predicated region
        $region73: #{tpu_custom_call.1} parent=71 // pred_check
          %p792 = pneg %p248
        $region74: #{tpu_custom_call.1} parent=71 // pred_check_branch
          %794 = sbr.rel (%p792) target = $region76
        $region75: #{tpu_custom_call.1} parent=71 // pred_region
          %s795 = sand.u32 %s233, 1
          %s796 = scalar_lea.sflag [#allocation4], %s795
          %s797 = sand.u32 %s233, 1
          %s798 = smul.addr %s797, 8
          %s799 = scalar_lea.vmem [#allocation10], %s798
          %800 = dma.done %s796, 128
        $region76: #{tpu_custom_call.1} parent=71 // pred_fallthru
          _
      $region72: #{tpu_custom_call.1} parent=5 // pred_fallthru
        _
    $region6: #{tpu_custom_call.1} parent=1 // loop_footer
      %s25 = sadd.s32 1, %s21
    $region7: #{tpu_custom_call.1} parent=1 // loop_footer_branch
      %20 = sbr.rel target = $region3
    $region8: #{tpu_custom_call.1} parent=1 // loop_exit
      _
    %801 = vsyncpa [#allocation3], 1
    %s802 = scalar_lea.sflag [#allocation3], 1
    %803 = vsyncpa %s802, 1
    %804 = vsyncpa [#allocation6], 1
    %805 = vsyncpa [#allocation9], 1
    %806 = vsyncpa [#allocation4], 1
    %s807 = scalar_lea.sflag [#allocation4], 1
    %808 = vsyncpa %s807, 1

// kernel: tpu_custom_call.1
$region0: #{tpu_custom_call.1}
  #allocation0 [shape = 'u32[]', space=smem, size = 0x4, offset = 0x4, fixed_abs, tag = 'smem constant byte address 0x4 - core index']
  #allocation1 [shape = 'u32[144,128]{1,0:T(1,128)}', space=vmem, size = 0x12000, scoped, tag = 'internal scratch']
  %s0 = inlined_call_operand.hbm [shape: bf16[1,16,128], index: 0, kind: input, shape index: {}]
  %s1 = inlined_call_operand.hbm [shape: bf16[1,128,128], index: 1, kind: input, shape index: {}]
  %s2 = inlined_call_operand.vmem [shape: f32[1,1,128], index: 2, kind: input, shape index: {}]
  %s3 = inlined_call_operand.hbm [shape: bf16[1,128,128], index: 3, kind: input, shape index: {}]
  %s4 = inlined_call_operand.vmem [shape: f32[1,1,128], index: 4, kind: input, shape index: {}]
  %s5 = inlined_call_operand.hbm [shape: bf16[1,128,128], index: 5, kind: input, shape index: {}]
  %s6 = inlined_call_operand.vmem [shape: f32[1,1,128], index: 6, kind: input, shape index: {}]
  %s7 = inlined_call_operand.hbm [shape: f32[1,16,128], index: 7, kind: output, shape index: {}]
  %s8 = sld [smem:[#allocation0]]
  $region77: #{tpu_custom_call.1} parent=0
    _
  %s10 = ssub.s32 1, %s8
  %s11 = scalar_select 0, %s10, %s8
  $region1: #{tpu_custom_call.1} parent=0
    #allocation2 [shape = 'u8[4096]{0}', space=vmem, size = 0x1000, scoped, tag = 'input window, operand 0']
    #allocation3 [shape = 's32[2]{0}', space=sflag, size = 0x8, scoped, tag = 'scoped memory for tpu_custom_call.1']
    #allocation4 [shape = 's32[2]{0}', space=sflag, size = 0x8, scoped, tag = 'scoped memory for tpu_custom_call.1']
    #allocation5 [shape = 'u8[32768]{0}', space=vmem, size = 0x8000, scoped, tag = 'input window, operand 1, single buffered']
    #allocation6 [shape = 's32[1]{0}', space=sflag, size = 0x4, scoped, tag = 'scoped memory for tpu_custom_call.1']
    #allocation7 [shape = 'u8[32768]{0}', space=vmem, size = 0x8000, scoped, tag = 'input window, operand 3, single buffered']
    #allocation8 [shape = 'u8[32768]{0}', space=vmem, size = 0x8000, scoped, tag = 'input window, operand 5, single buffered']
    #allocation9 [shape = 's32[1]{0}', space=sflag, size = 0x4, scoped, tag = 'scoped memory for tpu_custom_call.1']
    #allocation10 [shape = 'u8[8192]{0}', space=vmem, size = 0x2000, scoped, tag = 'output window, operand 0']
    %12 = vsyncpa [#allocation3], 0
    %s13 = scalar_lea.sflag [#allocation3], 1
    %14 = vsyncpa %s13, 0
    %15 = vsyncpa [#allocation6], 0
    %16 = vsyncpa [#allocation9], 0
    %17 = vsyncpa [#allocation4], 0
    %s18 = scalar_lea.sflag [#allocation4], 1
    %19 = vsyncpa %s18, 0
    loop: start=0, step=1, limit=4
    $region2: #{tpu_custom_call.1} parent=1 // loop_pre_header
      _
    $region3: #{tpu_custom_call.1} parent=1 // loop_header
      %s21 = sphi 0, %s25
      %p22 = scmp.ge.s32.totalorder %s21, 4
      %s28 = sphi 0, %s40
      %s29 = sphi 0, %s36
      %s30 = sphi 0, %s28
      %s31 = sphi 0, %s29
      %s32 = sphi 0, %s30
      %s33 = sphi 0, %s31
      %s45 = sphi 0, %s47
      %s48 = sphi 0, %s45
      %s49 = sphi 0, %s48
      %s65 = sphi 0, %s49
      %s71 = sphi 0, %s73
      %s74 = sphi 0, %s71
      %s75 = sphi 0, %s74
      %s91 = sphi 0, %s75
      %s97 = sphi 0, %s99
      %s100 = sphi 0, %s97
      %s101 = sphi 0, %s100
      %s117 = sphi 0, %s101
      %s123 = sphi 0, %s125
      %s126 = sphi 0, %s123
      %s127 = sphi 0, %s126
      %s143 = sphi 0, %s127
      %s149 = sphi 0, %s151
      %s152 = sphi 0, %s149
      %s153 = sphi 0, %s152
      %s169 = sphi 0, %s153
      %s175 = sphi 0, %s177
      %s178 = sphi 0, %s175
      %s179 = sphi 0, %s178
      %s195 = sphi 0, %s179
      %s201 = sphi 0, %s203
      %s204 = sphi 0, %s201
      %s205 = sphi 0, %s204
      %s221 = sphi 0, %s205
      %s229 = sphi 0, %s231
      %s232 = sphi 0, %s229
      %s233 = sphi 0, %s232
      %s249 = sphi 0, %s233
    $region4: #{tpu_custom_call.1} parent=1 // loop_header_branch
      %24 = sbr.rel (%p22) target = $region8
    $region5: #{tpu_custom_call.1} parent=1 // loop_body
      %s26 = ssub.s32 %s21, 1
      %s27 = ssub.s32 %s21, 2
      %s34 = sadd.s32 1, %s29
      %p35 = scmp.ge.s32.totalorder %s34, 2
      %s36 = scalar_select %p35, 0, %s34
      %s37 = sadd.s32 1, %s28
      %s38 = scalar_select %p35, %s37, %s28
      %p39 = scmp.ge.s32.totalorder %s38, 1
      %s40 = scalar_select %p39, 0, %s38
      %s41 = ssub.s32 %s28, %s40
      %s42 = ssub.s32 %s29, %s36
      %s43 = sor.u32 %s41, %s42
      %p44 = scmp.eq.s32.totalorder %s43, 0
      %s46 = sadd.s32 %s45, 1
      %s47 = scalar_select %p44, %s45, %s46
      %p50 = pneg %p44
      %p51 = scmp.eq.s32.totalorder %s21, 1
      %p52 = por %p50, %p51
      %p53 = scmp.ne.s32.totalorder %s45, %s48
      %p54 = scmp.eq.s32.totalorder %s21, 0
      %p55 = por %p53, %p54
      %p56 = scmp.ne.s32.totalorder %s45, %s48
      %p57 = scmp.eq.s32.totalorder %s26, 1
      %p58 = por %p56, %p57
      %p59 = scmp.ne.s32.totalorder %s48, %s49
      %p60 = scmp.eq.s32.totalorder %s26, 0
      %p61 = por %p59, %p60
      %p62 = scmp.ne.s32.totalorder %s48, %s49
      %p63 = scmp.eq.s32.totalorder %s27, 1
      %p64 = por %p62, %p63
      %p66 = scmp.ne.s32.totalorder %s49, %s65
      %p67 = scmp.eq.s32.totalorder %s27, 0
      %p68 = por %p66, %p67
      %s69 = ssub.s32 %s28, %s40
      %p70 = scmp.eq.s32.totalorder %s69, 0
      %s72 = sadd.s32 %s71, 1
      %s73 = scalar_select %p70, %s71, %s72
      %p76 = pneg %p70
      %p77 = scmp.eq.s32.totalorder %s21, 1
      %p78 = por %p76, %p77
      %p79 = scmp.ne.s32.totalorder %s71, %s74
      %p80 = scmp.eq.s32.totalorder %s21, 0
      %p81 = por %p79, %p80
      %p82 = scmp.ne.s32.totalorder %s71, %s74
      %p83 = scmp.eq.s32.totalorder %s26, 1
      %p84 = por %p82, %p83
      %p85 = scmp.ne.s32.totalorder %s74, %s75
      %p86 = scmp.eq.s32.totalorder %s26, 0
      %p87 = por %p85, %p86
      %p88 = scmp.ne.s32.totalorder %s74, %s75
      %p89 = scmp.eq.s32.totalorder %s27, 1
      %p90 = por %p88, %p89
      %p92 = scmp.ne.s32.totalorder %s75, %s91
      %p93 = scmp.eq.s32.totalorder %s27, 0
      %p94 = por %p92, %p93
      %s95 = ssub.s32 %s28, %s40
      %p96 = scmp.eq.s32.totalorder %s95, 0
      %s98 = sadd.s32 %s97, 1
      %s99 = scalar_select %p96, %s97, %s98
      %p102 = pneg %p96
      %p103 = scmp.eq.s32.totalorder %s21, 1
      %p104 = por %p102, %p103
      %p105 = scmp.ne.s32.totalorder %s97, %s100
      %p106 = scmp.eq.s32.totalorder %s21, 0
      %p107 = por %p105, %p106
      %p108 = scmp.ne.s32.totalorder %s97, %s100
      %p109 = scmp.eq.s32.totalorder %s26, 1
      %p110 = por %p108, %p109
      %p111 = scmp.ne.s32.totalorder %s100, %s101
      %p112 = scmp.eq.s32.totalorder %s26, 0
      %p113 = por %p111, %p112
      %p114 = scmp.ne.s32.totalorder %s100, %s101
      %p115 = scmp.eq.s32.totalorder %s27, 1
      %p116 = por %p114, %p115
      %p118 = scmp.ne.s32.totalorder %s101, %s117
      %p119 = scmp.eq.s32.totalorder %s27, 0
      %p120 = por %p118, %p119
      %s121 = ssub.s32 %s28, %s40
      %p122 = scmp.eq.s32.totalorder %s121, 0
      %s124 = sadd.s32 %s123, 1
      %s125 = scalar_select %p122, %s123, %s124
      %p128 = pneg %p122
      %p129 = scmp.eq.s32.totalorder %s21, 1
      %p130 = por %p128, %p129
      %p131 = scmp.ne.s32.totalorder %s123, %s126
      %p132 = scmp.eq.s32.totalorder %s21, 0
      %p133 = por %p131, %p132
      %p134 = scmp.ne.s32.totalorder %s123, %s126
      %p135 = scmp.eq.s32.totalorder %s26, 1
      %p136 = por %p134, %p135
      %p137 = scmp.ne.s32.totalorder %s126, %s127
      %p138 = scmp.eq.s32.totalorder %s26, 0
      %p139 = por %p137, %p138
      %p140 = scmp.ne.s32.totalorder %s126, %s127
      %p141 = scmp.eq.s32.totalorder %s27, 1
      %p142 = por %p140, %p141
      %p144 = scmp.ne.s32.totalorder %s127, %s143
      %p145 = scmp.eq.s32.totalorder %s27, 0
      %p146 = por %p144, %p145
      %s147 = ssub.s32 %s28, %s40
      %p148 = scmp.eq.s32.totalorder %s147, 0
      %s150 = sadd.s32 %s149, 1
      %s151 = scalar_select %p148, %s149, %s150
      %p154 = pneg %p148
      %p155 = scmp.eq.s32.totalorder %s21, 1
      %p156 = por %p154, %p155
      %p157 = scmp.ne.s32.totalorder %s149, %s152
      %p158 = scmp.eq.s32.totalorder %s21, 0
      %p159 = por %p157, %p158
      %p160 = scmp.ne.s32.totalorder %s149, %s152
      %p161 = scmp.eq.s32.totalorder %s26, 1
      %p162 = por %p160, %p161
      %p163 = scmp.ne.s32.totalorder %s152, %s153
      %p164 = scmp.eq.s32.totalorder %s26, 0
      %p165 = por %p163, %p164
      %p166 = scmp.ne.s32.totalorder %s152, %s153
      %p167 = scmp.eq.s32.totalorder %s27, 1
      %p168 = por %p166, %p167
      %p170 = scmp.ne.s32.totalorder %s153, %s169
      %p171 = scmp.eq.s32.totalorder %s27, 0
      %p172 = por %p170, %p171
      %s173 = ssub.s32 %s28, %s40
      %p174 = scmp.eq.s32.totalorder %s173, 0
      %s176 = sadd.s32 %s175, 1
      %s177 = scalar_select %p174, %s175, %s176
      %p180 = pneg %p174
      %p181 = scmp.eq.s32.totalorder %s21, 1
      %p182 = por %p180, %p181
      %p183 = scmp.ne.s32.totalorder %s175, %s178
      %p184 = scmp.eq.s32.totalorder %s21, 0
      %p185 = por %p183, %p184
      %p186 = scmp.ne.s32.totalorder %s175, %s178
      %p187 = scmp.eq.s32.totalorder %s26, 1
      %p188 = por %p186, %p187
      %p189 = scmp.ne.s32.totalorder %s178, %s179
      %p190 = scmp.eq.s32.totalorder %s26, 0
      %p191 = por %p189, %p190
      %p192 = scmp.ne.s32.totalorder %s178, %s179
      %p193 = scmp.eq.s32.totalorder %s27, 1
      %p194 = por %p192, %p193
      %p196 = scmp.ne.s32.totalorder %s179, %s195
      %p197 = scmp.eq.s32.totalorder %s27, 0
      %p198 = por %p196, %p197
      %s199 = ssub.s32 %s28, %s40
      %p200 = scmp.eq.s32.totalorder %s199, 0
      %s202 = sadd.s32 %s201, 1
      %s203 = scalar_select %p200, %s201, %s202
      %p206 = pneg %p200
      %p207 = scmp.eq.s32.totalorder %s21, 1
      %p208 = por %p206, %p207
      %p209 = scmp.ne.s32.totalorder %s201, %s204
      %p210 = scmp.eq.s32.totalorder %s21, 0
      %p211 = por %p209, %p210
      %p212 = scmp.ne.s32.totalorder %s201, %s204
      %p213 = scmp.eq.s32.totalorder %s26, 1
      %p214 = por %p212, %p213
      %p215 = scmp.ne.s32.totalorder %s204, %s205
      %p216 = scmp.eq.s32.totalorder %s26, 0
      %p217 = por %p215, %p216
      %p218 = scmp.ne.s32.totalorder %s204, %s205
      %p219 = scmp.eq.s32.totalorder %s27, 1
      %p220 = por %p218, %p219
      %p222 = scmp.ne.s32.totalorder %s205, %s221
      %p223 = scmp.eq.s32.totalorder %s27, 0
      %p224 = por %p222, %p223
      %s225 = ssub.s32 %s28, %s40
      %s226 = ssub.s32 %s29, %s36
      %s227 = sor.u32 %s225, %s226
      %p228 = scmp.eq.s32.totalorder %s227, 0
      %s230 = sadd.s32 %s229, 1
      %s231 = scalar_select %p228, %s229, %s230
      %p234 = pneg %p228
      %p235 = scmp.eq.s32.totalorder %s21, 1
      %p236 = por %p234, %p235
      %p237 = scmp.ne.s32.totalorder %s229, %s232
      %p238 = scmp.eq.s32.totalorder %s21, 0
      %p239 = por %p237, %p238
      %p240 = scmp.ne.s32.totalorder %s229, %s232
      %p241 = scmp.eq.s32.totalorder %s26, 1
      %p242 = por %p240, %p241
      %p243 = scmp.ne.s32.totalorder %s232, %s233
      %p244 = scmp.eq.s32.totalorder %s26, 0
      %p245 = por %p243, %p244
      %p246 = scmp.ne.s32.totalorder %s232, %s233
      %p247 = scmp.eq.s32.totalorder %s27, 1
      %p248 = por %p246, %p247
      %p250 = scmp.ne.s32.totalorder %s233, %s249
      %p251 = scmp.eq.s32.totalorder %s27, 0
      %p252 = por %p250, %p251
      %p253 = scmp.le.s32.totalorder 1, %s21
      %p254 = scmp.lt.s32.totalorder %s21, 3
      %p255 = pnand %p253, %p254
      %p256 = pneg %p255
      // Predicated region
      $region9: #{tpu_custom_call.1} parent=5 // pred_check
        _
      $region10: #{tpu_custom_call.1} parent=5 // pred_check_branch
        %258 = sbr.rel (%p255) target = $region12
      $region11: #{tpu_custom_call.1} parent=5 // pred_region
        %s259 = ssub.s32 %s21, 1
        // Predicated region
        $region13: #{tpu_custom_call.1} parent=11 // pred_check
          %p260 = pneg %p87
        $region14: #{tpu_custom_call.1} parent=11 // pred_check_branch
          %262 = sbr.rel (%p260) target = $region16
        $region15: #{tpu_custom_call.1} parent=11 // pred_region
          %s264 = ssub.s32 1024, 1024
          %265 = vsyncadd [#allocation6], %s264
          %s266 = smul.addr %s30, 16
          %s267 = smul.addr %s266, 64
          %s268 = scalar_lea.hbm %s1, %s267
          %s269 = sshll.u32 [#allocation5], 4
          %s270 = int_to_ptr.vmem [resolvable:$true] %s269
          %275 = dma.hbm_to_vmem [thread:$0]  %s268, 1024, %s270, [#allocation6], 64, 64, 4
        $region16: #{tpu_custom_call.1} parent=11 // pred_fallthru
          _
        // Predicated region
        $region17: #{tpu_custom_call.1} parent=11 // pred_check
          %p276 = pneg %p113
        $region18: #{tpu_custom_call.1} parent=11 // pred_check_branch
          %278 = sbr.rel (%p276) target = $region20
        $region19: #{tpu_custom_call.1} parent=11 // pred_region
          %p279 = scmp.lt.s32.totalorder %s30, 0
          %s280 = scalar_select %p279, %s30, 0
          %s281 = scalar_lea.vmem %s2, %s280
        $region20: #{tpu_custom_call.1} parent=11 // pred_fallthru
          _
        // Predicated region
        $region21: #{tpu_custom_call.1} parent=11 // pred_check
          %p282 = pneg %p139
        $region22: #{tpu_custom_call.1} parent=11 // pred_check_branch
          %284 = sbr.rel (%p282) target = $region24
        $region23: #{tpu_custom_call.1} parent=11 // pred_region
          %s286 = ssub.s32 1024, 1024
          %287 = vsyncadd [#allocation6], %s286
          %s288 = smul.addr %s30, 16
          %s289 = smul.addr %s288, 64
          %s290 = scalar_lea.hbm %s3, %s289
          %s291 = sshll.u32 [#allocation7], 4
          %s292 = int_to_ptr.vmem [resolvable:$true] %s291
          %297 = dma.hbm_to_vmem [thread:$0]  %s290, 1024, %s292, [#allocation6], 64, 64, 4
        $region24: #{tpu_custom_call.1} parent=11 // pred_fallthru
          _
        // Predicated region
        $region25: #{tpu_custom_call.1} parent=11 // pred_check
          %p298 = pneg %p165
        $region26: #{tpu_custom_call.1} parent=11 // pred_check_branch
          %300 = sbr.rel (%p298) target = $region28
        $region27: #{tpu_custom_call.1} parent=11 // pred_region
          %p301 = scmp.lt.s32.totalorder %s30, 0
          %s302 = scalar_select %p301, %s30, 0
          %s303 = scalar_lea.vmem %s4, %s302
        $region28: #{tpu_custom_call.1} parent=11 // pred_fallthru
          _
        // Predicated region
        $region29: #{tpu_custom_call.1} parent=11 // pred_check
          %p304 = pneg %p191
        $region30: #{tpu_custom_call.1} parent=11 // pred_check_branch
          %306 = sbr.rel (%p304) target = $region32
        $region31: #{tpu_custom_call.1} parent=11 // pred_region
          %s308 = ssub.s32 1024, 1024
          %309 = vsyncadd [#allocation9], %s308
          %s310 = smul.addr %s30, 16
          %s311 = smul.addr %s310, 64
          %s312 = scalar_lea.hbm %s5, %s311
          %s313 = sshll.u32 [#allocation8], 4
          %s314 = int_to_ptr.vmem [resolvable:$true] %s313
          %319 = dma.hbm_to_vmem [thread:$0]  %s312, 1024, %s314, [#allocation9], 64, 64, 4
        $region32: #{tpu_custom_call.1} parent=11 // pred_fallthru
          _
        // Predicated region
        $region33: #{tpu_custom_call.1} parent=11 // pred_check
          %p320 = pneg %p217
        $region34: #{tpu_custom_call.1} parent=11 // pred_check_branch
          %322 = sbr.rel (%p320) target = $region36
        $region35: #{tpu_custom_call.1} parent=11 // pred_region
          %p323 = scmp.lt.s32.totalorder %s30, 0
          %s324 = scalar_select %p323, %s30, 0
          %s325 = scalar_lea.vmem %s6, %s324
        $region36: #{tpu_custom_call.1} parent=11 // pred_fallthru
          _
      $region12: #{tpu_custom_call.1} parent=5 // pred_fallthru
        _
      %p326 = scmp.lt.s32.totalorder %s21, 2
      // Predicated region
      $region37: #{tpu_custom_call.1} parent=5 // pred_check
        %p327 = pneg %p326
      $region38: #{tpu_custom_call.1} parent=5 // pred_check_branch
        %329 = sbr.rel (%p327) target = $region40
      $region39: #{tpu_custom_call.1} parent=5 // pred_region
        // Predicated region
        $region41: #{tpu_custom_call.1} parent=39 // pred_check
          %p330 = pneg %p55
        $region42: #{tpu_custom_call.1} parent=39 // pred_check_branch
          %332 = sbr.rel (%p330) target = $region44
        $region43: #{tpu_custom_call.1} parent=39 // pred_region
          %s333 = sand.u32 %s45, 1
          %s334 = scalar_lea.sflag [#allocation3], %s333
          %s335 = sand.u32 %s45, 1
          %s336 = smul.addr %s335, 4
          %s337 = scalar_lea.vmem [#allocation2], %s336
          %s339 = ssub.s32 64, 64
          %340 = vsyncadd %s334, %s339
          %s341 = smul.addr %s28, 2
          %s342 = sadd.s32 %s29, %s341
          %s343 = smul.addr %s342, 64
          %s344 = scalar_lea.hbm %s0, %s343
          %s346 = sshll.u32 %s337, 4
          %s347 = int_to_ptr.vmem [resolvable:$true] %s346
          %349 = dma.hbm_to_vmem [thread:$0]  %s344, 64, %s347, %s334
        $region44: #{tpu_custom_call.1} parent=39 // pred_fallthru
          _
      $region40: #{tpu_custom_call.1} parent=5 // pred_fallthru
        _
      %p350 = scmp.le.s32.totalorder 1, %s21
      %p351 = scmp.lt.s32.totalorder %s21, 3
      %p352 = pnand %p350, %p351
      %p353 = pneg %p352
      // Predicated region
      $region45: #{tpu_custom_call.1} parent=5 // pred_check
        _
      $region46: #{tpu_custom_call.1} parent=5 // pred_check_branch
        %355 = sbr.rel (%p352) target = $region48
      $region47: #{tpu_custom_call.1} parent=5 // pred_region
        %s356 = ssub.s32 %s21, 1
        %s357 = sand.u32 %s48, 1
        %s358 = scalar_lea.sflag [#allocation3], %s357
        %s359 = sand.u32 %s48, 1
        %s360 = smul.addr %s359, 4
        %s361 = scalar_lea.vmem [#allocation2], %s360
        // Predicated region
        $region49: #{tpu_custom_call.1} parent=47 // pred_check
          %p362 = pneg %p61
        $region50: #{tpu_custom_call.1} parent=47 // pred_check_branch
          %364 = sbr.rel (%p362) target = $region52
        $region51: #{tpu_custom_call.1} parent=47 // pred_region
          %365 = dma.done %s358, 64
        $region52: #{tpu_custom_call.1} parent=47 // pred_fallthru
          _
        // Predicated region
        $region53: #{tpu_custom_call.1} parent=47 // pred_check
          %p366 = pneg %p87
        $region54: #{tpu_custom_call.1} parent=47 // pred_check_branch
          %368 = sbr.rel (%p366) target = $region56
        $region55: #{tpu_custom_call.1} parent=47 // pred_region
          %369 = dma.done [#allocation6], 1024
        $region56: #{tpu_custom_call.1} parent=47 // pred_fallthru
          _
        // Predicated region
        $region57: #{tpu_custom_call.1} parent=47 // pred_check
          %p370 = pneg %p139
        $region58: #{tpu_custom_call.1} parent=47 // pred_check_branch
          %372 = sbr.rel (%p370) target = $region60
        $region59: #{tpu_custom_call.1} parent=47 // pred_region
          %373 = dma.done [#allocation6], 1024
        $region60: #{tpu_custom_call.1} parent=47 // pred_fallthru
          _
        // Predicated region
        $region61: #{tpu_custom_call.1} parent=47 // pred_check
          %p374 = pneg %p191
        $region62: #{tpu_custom_call.1} parent=47 // pred_check_branch
          %376 = sbr.rel (%p374) target = $region64
        $region63: #{tpu_custom_call.1} parent=47 // pred_region
          %377 = dma.done [#allocation9], 1024
        $region64: #{tpu_custom_call.1} parent=47 // pred_fallthru
          _
        %s378 = sand.u32 %s48, 1
        %s379 = scalar_lea.sflag [#allocation3], %s378
        %s380 = sand.u32 %s48, 1
        %s381 = smul.addr %s380, 4
        %s382 = scalar_lea.vmem [#allocation2], %s381
        %p383 = pneg %p61
        %p384 = pneg %p58
        %p385 = pneg %p87
        %p386 = pneg %p84
        %p387 = scmp.lt.s32.totalorder %s30, 0
        %s388 = scalar_select %p387, %s30, 0
        %s389 = scalar_lea.vmem %s2, %s388
        %p390 = pneg %p113
        %p391 = pneg %p110
        %p392 = pneg %p139
        %p393 = pneg %p136
        %p394 = scmp.lt.s32.totalorder %s30, 0
        %s395 = scalar_select %p394, %s30, 0
        %s396 = scalar_lea.vmem %s4, %s395
        %p397 = pneg %p165
        %p398 = pneg %p162
        %p399 = pneg %p191
        %p400 = pneg %p188
        %p401 = scmp.lt.s32.totalorder %s30, 0
        %s402 = scalar_select %p401, %s30, 0
        %s403 = scalar_lea.vmem %s6, %s402
        %p404 = pneg %p217
        %p405 = pneg %p214
        %p406 = pneg %p245
        %p407 = pneg %p242
        %s408 = sand.u32 %s232, 1
        %s409 = scalar_lea.sflag [#allocation4], %s408
        %s410 = sand.u32 %s232, 1
        %s411 = smul.addr %s410, 8
        %s412 = scalar_lea.vmem [#allocation10], %s411
        %p413 = scmp.lt.s32.totalorder %s30, 0
        %s414 = scalar_select %p413, %s30, 0
        %s415 = scalar_lea.vmem %s2, %s414
        %p416 = scmp.lt.s32.totalorder %s30, 0
        %s417 = scalar_select %p416, %s30, 0
        %s418 = scalar_lea.vmem %s4, %s417
        %p419 = scmp.lt.s32.totalorder %s30, 0
        %s420 = scalar_select %p419, %s30, 0
        %s421 = scalar_lea.vmem %s6, %s420
        %v423 = vld [vmem:[%s361] sm:$0xf]
        %v424 = vld [vmem:[#allocation5] sm:$0xf]
        %v425 = vld [vmem:[#allocation5 + $0x4] sm:$0xf]
        %v426 = vld [vmem:[#allocation5 + $0x8] sm:$0xf]
        %v427 = vld [vmem:[#allocation5 + $0xc] sm:$0xf]
        %v428 = vld [vmem:[#allocation5 + $0x10] sm:$0xf]
        %v429 = vld [vmem:[#allocation5 + $0x14] sm:$0xf]
        %v430 = vld [vmem:[#allocation5 + $0x18] sm:$0xf]
        %v431 = vld [vmem:[#allocation5 + $0x1c] sm:$0xf]
        %v432 = vld [vmem:[#allocation5 + $0x20] sm:$0xf]
        %v433 = vld [vmem:[#allocation5 + $0x24] sm:$0xf]
        %v434 = vld [vmem:[#allocation5 + $0x28] sm:$0xf]
        %v435 = vld [vmem:[#allocation5 + $0x2c] sm:$0xf]
        %v436 = vld [vmem:[#allocation5 + $0x30] sm:$0xf]
        %v437 = vld [vmem:[#allocation5 + $0x34] sm:$0xf]
        %v438 = vld [vmem:[#allocation5 + $0x38] sm:$0xf]
        %v439 = vld [vmem:[#allocation5 + $0x3c] sm:$0xf]
        %v440 = vld [vmem:[%s415] sm:$0x1]
        %v442 = vlaneseq
        %v443 = vshrl.u32 %v442, 7
        %v444 = vsub.s32 0, %v443
        %v445 = vrot.slane %v440, %v444
        %v463 = vunpack.c.l.b16 %v424
        %v464 = vunpack.c.l.b16 %v425
        %v465 = vunpack.c.l.b16 %v426
        %v466 = vunpack.c.l.b16 %v427
        %v467 = vunpack.c.l.b16 %v428
        %v468 = vunpack.c.l.b16 %v429
        %v469 = vunpack.c.l.b16 %v430
        %v470 = vunpack.c.l.b16 %v431
        %v471 = vunpack.c.l.b16 %v432
        %v472 = vunpack.c.l.b16 %v433
        %v473 = vunpack.c.l.b16 %v434
        %v474 = vunpack.c.l.b16 %v435
        %v475 = vunpack.c.l.b16 %v436
        %v476 = vunpack.c.l.b16 %v437
        %v477 = vunpack.c.l.b16 %v438
        %v478 = vunpack.c.l.b16 %v439
        %v479 = vpack.c.b16 %v464, %v463
        %v480 = vpack.c.b16 %v466, %v465
        %v481 = vpack.c.b16 %v468, %v467
        %v482 = vpack.c.b16 %v470, %v469
        %v483 = vpack.c.b16 %v472, %v471
        %v484 = vpack.c.b16 %v474, %v473
        %v485 = vpack.c.b16 %v476, %v475
        %v486 = vpack.c.b16 %v478, %v477
        %495 = vmatprep.subr.bf16.mxu0 0
        %496 = vmatpush1.bf16.msra.mxu0 %v479
        %497 = vmatprep.subr.bf16.mxu0 0
        %498 = vmatpush1.bf16.msra.mxu0 %v480
        %499 = vmatprep.subr.bf16.mxu0 0
        %500 = vmatpush1.bf16.msra.mxu0 %v481
        %501 = vmatprep.subr.bf16.mxu0 0
        %502 = vmatpush1.bf16.msra.mxu0 %v482
        %503 = vmatprep.subr.bf16.mxu0 0
        %504 = vmatpush1.bf16.msra.mxu0 %v483
        %505 = vmatprep.subr.bf16.mxu0 0
        %506 = vmatpush1.bf16.msra.mxu0 %v484
        %507 = vmatprep.subr.bf16.mxu0 0
        %508 = vmatpush1.bf16.msra.mxu0 %v485
        %509 = vmatprep.subr.bf16.mxu0 0
        %510 = vmatpush1.bf16.msra.mxu0 %v486
        %511 = vmatprep.subr.bf16.mxu0 0
        %512 = vmatpush1.bf16.msra.mxu0 0
        %513 = vmatprep.subr.bf16.mxu0 0
        %514 = vmatpush1.bf16.msra.mxu0 0
        %515 = vmatprep.subr.bf16.mxu0 0
        %516 = vmatpush1.bf16.msra.mxu0 0
        %517 = vmatprep.subr.bf16.mxu0 0
        %518 = vmatpush1.bf16.msra.mxu0 0
        %519 = vmatprep.subr.bf16.mxu0 0
        %520 = vmatpush1.bf16.msra.mxu0 0
        %521 = vmatprep.subr.bf16.mxu0 0
        %522 = vmatpush1.bf16.msra.mxu0 0
        %523 = vmatprep.subr.bf16.mxu0 0
        %524 = vmatpush1.bf16.msra.mxu0 0
        %525 = vmatprep.subr.bf16.mxu0 0
        %526 = vmatpush1.bf16.msra.mxu0 0
        %527 = vmatprep.mubr.bf16.mxu0 0
        %528 = vmatmul.mubr.bf16.gmra.mrb[0].mxu0 %v423
        %v529 = vpop.f32.mrb[0].mxu0
        %v530 = vadd.f32 %v445, %v529
        %v531 = vpop.f32.mrb[0].mxu0
        %v532 = vpop.f32.mrb[0].mxu0
        %v533 = vpop.f32.mrb[0].mxu0
        %534 = vdwg.mxu0
        %v535 = vmax.f32 %v530, 0.0
        %v536 = vpack.c.bf16 %v535, %v535
        %v537 = vld [vmem:[#allocation7] sm:$0xf]
        %v538 = vld [vmem:[#allocation7 + $0x4] sm:$0xf]
        %v539 = vld [vmem:[#allocation7 + $0x8] sm:$0xf]
        %v540 = vld [vmem:[#allocation7 + $0xc] sm:$0xf]
        %v541 = vld [vmem:[#allocation7 + $0x10] sm:$0xf]
        %v542 = vld [vmem:[#allocation7 + $0x14] sm:$0xf]
        %v543 = vld [vmem:[#allocation7 + $0x18] sm:$0xf]
        %v544 = vld [vmem:[#allocation7 + $0x1c] sm:$0xf]
        %v545 = vld [vmem:[#allocation7 + $0x20] sm:$0xf]
        %v546 = vld [vmem:[#allocation7 + $0x24] sm:$0xf]
        %v547 = vld [vmem:[#allocation7 + $0x28] sm:$0xf]
        %v548 = vld [vmem:[#allocation7 + $0x2c] sm:$0xf]
        %v549 = vld [vmem:[#allocation7 + $0x30] sm:$0xf]
        %v550 = vld [vmem:[#allocation7 + $0x34] sm:$0xf]
        %v551 = vld [vmem:[#allocation7 + $0x38] sm:$0xf]
        %v552 = vld [vmem:[#allocation7 + $0x3c] sm:$0xf]
        %v553 = vld [vmem:[%s418] sm:$0x1]
        %v555 = vlaneseq
        %v556 = vshrl.u32 %v555, 7
        %v557 = vsub.s32 0, %v556
        %v558 = vrot.slane %v553, %v557
        %v576 = vunpack.c.l.b16 %v537
        %v577 = vunpack.c.l.b16 %v538
        %v578 = vunpack.c.l.b16 %v539
        %v579 = vunpack.c.l.b16 %v540
        %v580 = vunpack.c.l.b16 %v541
        %v581 = vunpack.c.l.b16 %v542
        %v582 = vunpack.c.l.b16 %v543
        %v583 = vunpack.c.l.b16 %v544
        %v584 = vunpack.c.l.b16 %v545
        %v585 = vunpack.c.l.b16 %v546
        %v586 = vunpack.c.l.b16 %v547
        %v587 = vunpack.c.l.b16 %v548
        %v588 = vunpack.c.l.b16 %v549
        %v589 = vunpack.c.l.b16 %v550
        %v590 = vunpack.c.l.b16 %v551
        %v591 = vunpack.c.l.b16 %v552
        %v592 = vpack.c.b16 %v577, %v576
        %v593 = vpack.c.b16 %v579, %v578
        %v594 = vpack.c.b16 %v581, %v580
        %v595 = vpack.c.b16 %v583, %v582
        %v596 = vpack.c.b16 %v585, %v584
        %v597 = vpack.c.b16 %v587, %v586
        %v598 = vpack.c.b16 %v589, %v588
        %v599 = vpack.c.b16 %v591, %v590
        %608 = vmatprep.subr.bf16.mxu0 0
        %609 = vmatpush1.bf16.msra.mxu0 %v592
        %610 = vmatprep.subr.bf16.mxu0 0
        %611 = vmatpush1.bf16.msra.mxu0 %v593
        %612 = vmatprep.subr.bf16.mxu0 0
        %613 = vmatpush1.bf16.msra.mxu0 %v594
        %614 = vmatprep.subr.bf16.mxu0 0
        %615 = vmatpush1.bf16.msra.mxu0 %v595
        %616 = vmatprep.subr.bf16.mxu0 0
        %617 = vmatpush1.bf16.msra.mxu0 %v596
        %618 = vmatprep.subr.bf16.mxu0 0
        %619 = vmatpush1.bf16.msra.mxu0 %v597
        %620 = vmatprep.subr.bf16.mxu0 0
        %621 = vmatpush1.bf16.msra.mxu0 %v598
        %622 = vmatprep.subr.bf16.mxu0 0
        %623 = vmatpush1.bf16.msra.mxu0 %v599
        %624 = vmatprep.subr.bf16.mxu0 0
        %625 = vmatpush1.bf16.msra.mxu0 0
        %626 = vmatprep.subr.bf16.mxu0 0
        %627 = vmatpush1.bf16.msra.mxu0 0
        %628 = vmatprep.subr.bf16.mxu0 0
        %629 = vmatpush1.bf16.msra.mxu0 0
        %630 = vmatprep.subr.bf16.mxu0 0
        %631 = vmatpush1.bf16.msra.mxu0 0
        %632 = vmatprep.subr.bf16.mxu0 0
        %633 = vmatpush1.bf16.msra.mxu0 0
        %634 = vmatprep.subr.bf16.mxu0 0
        %635 = vmatpush1.bf16.msra.mxu0 0
        %636 = vmatprep.subr.bf16.mxu0 0
        %637 = vmatpush1.bf16.msra.mxu0 0
        %638 = vmatprep.subr.bf16.mxu0 0
        %639 = vmatpush1.bf16.msra.mxu0 0
        %640 = vmatprep.mubr.bf16.mxu0 0
        %641 = vmatmul.mubr.bf16.gmra.mrb[0].mxu0 %v536
        %v642 = vpop.f32.mrb[0].mxu0
        %v643 = vadd.f32 %v558, %v642
        %v644 = vpop.f32.mrb[0].mxu0
        %v645 = vpop.f32.mrb[0].mxu0
        %v646 = vpop.f32.mrb[0].mxu0
        %647 = vdwg.mxu0
        %v648 = vmax.f32 %v643, 0.0
        %v649 = vpack.c.bf16 %v648, %v648
        %v650 = vld [vmem:[#allocation8] sm:$0xf]
        %v651 = vld [vmem:[#allocation8 + $0x4] sm:$0xf]
        %v652 = vld [vmem:[#allocation8 + $0x8] sm:$0xf]
        %v653 = vld [vmem:[#allocation8 + $0xc] sm:$0xf]
        %v654 = vld [vmem:[#allocation8 + $0x10] sm:$0xf]
        %v655 = vld [vmem:[#allocation8 + $0x14] sm:$0xf]
        %v656 = vld [vmem:[#allocation8 + $0x18] sm:$0xf]
        %v657 = vld [vmem:[#allocation8 + $0x1c] sm:$0xf]
        %v658 = vld [vmem:[#allocation8 + $0x20] sm:$0xf]
        %v659 = vld [vmem:[#allocation8 + $0x24] sm:$0xf]
        %v660 = vld [vmem:[#allocation8 + $0x28] sm:$0xf]
        %v661 = vld [vmem:[#allocation8 + $0x2c] sm:$0xf]
        %v662 = vld [vmem:[#allocation8 + $0x30] sm:$0xf]
        %v663 = vld [vmem:[#allocation8 + $0x34] sm:$0xf]
        %v664 = vld [vmem:[#allocation8 + $0x38] sm:$0xf]
        %v665 = vld [vmem:[#allocation8 + $0x3c] sm:$0xf]
        %v666 = vld [vmem:[%s421] sm:$0x1]
        %v668 = vlaneseq
        %v669 = vshrl.u32 %v668, 7
        %v670 = vsub.s32 0, %v669
        %v671 = vrot.slane %v666, %v670
        %v689 = vunpack.c.l.b16 %v650
        %v690 = vunpack.c.l.b16 %v651
        %v691 = vunpack.c.l.b16 %v652
        %v692 = vunpack.c.l.b16 %v653
        %v693 = vunpack.c.l.b16 %v654
        %v694 = vunpack.c.l.b16 %v655
        %v695 = vunpack.c.l.b16 %v656
        %v696 = vunpack.c.l.b16 %v657
        %v697 = vunpack.c.l.b16 %v658
        %v698 = vunpack.c.l.b16 %v659
        %v699 = vunpack.c.l.b16 %v660
        %v700 = vunpack.c.l.b16 %v661
        %v701 = vunpack.c.l.b16 %v662
        %v702 = vunpack.c.l.b16 %v663
        %v703 = vunpack.c.l.b16 %v664
        %v704 = vunpack.c.l.b16 %v665
        %v705 = vpack.c.b16 %v690, %v689
        %v706 = vpack.c.b16 %v692, %v691
        %v707 = vpack.c.b16 %v694, %v693
        %v708 = vpack.c.b16 %v696, %v695
        %v709 = vpack.c.b16 %v698, %v697
        %v710 = vpack.c.b16 %v700, %v699
        %v711 = vpack.c.b16 %v702, %v701
        %v712 = vpack.c.b16 %v704, %v703
        %721 = vmatprep.subr.bf16.mxu0 0
        %722 = vmatpush1.bf16.msra.mxu0 %v705
        %723 = vmatprep.subr.bf16.mxu0 0
        %724 = vmatpush1.bf16.msra.mxu0 %v706
        %725 = vmatprep.subr.bf16.mxu0 0
        %726 = vmatpush1.bf16.msra.mxu0 %v707
        %727 = vmatprep.subr.bf16.mxu0 0
        %728 = vmatpush1.bf16.msra.mxu0 %v708
        %729 = vmatprep.subr.bf16.mxu0 0
        %730 = vmatpush1.bf16.msra.mxu0 %v709
        %731 = vmatprep.subr.bf16.mxu0 0
        %732 = vmatpush1.bf16.msra.mxu0 %v710
        %733 = vmatprep.subr.bf16.mxu0 0
        %734 = vmatpush1.bf16.msra.mxu0 %v711
        %735 = vmatprep.subr.bf16.mxu0 0
        %736 = vmatpush1.bf16.msra.mxu0 %v712
        %737 = vmatprep.subr.bf16.mxu0 0
        %738 = vmatpush1.bf16.msra.mxu0 0
        %739 = vmatprep.subr.bf16.mxu0 0
        %740 = vmatpush1.bf16.msra.mxu0 0
        %741 = vmatprep.subr.bf16.mxu0 0
        %742 = vmatpush1.bf16.msra.mxu0 0
        %743 = vmatprep.subr.bf16.mxu0 0
        %744 = vmatpush1.bf16.msra.mxu0 0
        %745 = vmatprep.subr.bf16.mxu0 0
        %746 = vmatpush1.bf16.msra.mxu0 0
        %747 = vmatprep.subr.bf16.mxu0 0
        %748 = vmatpush1.bf16.msra.mxu0 0
        %749 = vmatprep.subr.bf16.mxu0 0
        %750 = vmatpush1.bf16.msra.mxu0 0
        %751 = vmatprep.subr.bf16.mxu0 0
        %752 = vmatpush1.bf16.msra.mxu0 0
        %753 = vmatprep.mubr.bf16.mxu0 0
        %754 = vmatmul.mubr.bf16.gmra.mrb[0].mxu0 %v649
        %v755 = vpop.f32.mrb[0].mxu0
        %v756 = vadd.f32 %v671, %v755
        %v757 = vpop.f32.mrb[0].mxu0
        %v758 = vpop.f32.mrb[0].mxu0
        %v759 = vpop.f32.mrb[0].mxu0
        %760 = vdwg.mxu0
        %v761 = vsub.f32 0.0, %v756
        %v762 = vmul.f32 %v761, 1.442695
        %v763 = vpow.pop %v762
        %v764 = vadd.f32 %v763, 1.0
        %v765 = vrcp.pop %v764
        %766 = vst [vmem:[%s412] sm:$0xff] %v765
        %s767 = sand.u32 %s232, 1
        %s768 = scalar_lea.sflag [#allocation4], %s767
        %s769 = sand.u32 %s232, 1
        %s770 = smul.addr %s769, 8
        %s771 = scalar_lea.vmem [#allocation10], %s770
        // Predicated region
        $region65: #{tpu_custom_call.1} parent=47 // pred_check
          %p772 = pneg %p242
        $region66: #{tpu_custom_call.1} parent=47 // pred_check_branch
          %774 = sbr.rel (%p772) target = $region68
        $region67: #{tpu_custom_call.1} parent=47 // pred_region
          %s776 = ssub.s32 128, 128
          %777 = vsyncadd %s768, %s776
          %s778 = smul.addr %s30, 2
          %s779 = sadd.s32 %s31, %s778
          %s780 = smul.addr %s779, 128
          %s781 = scalar_lea.hbm %s7, %s780
          %s783 = sshll.u32 %s771, 4
          %s784 = int_to_ptr.vmem [resolvable:$true] %s783
          %786 = dma.vmem_to_hbm [thread:$0]  %s784, 128, %s781, %s768
        $region68: #{tpu_custom_call.1} parent=47 // pred_fallthru
          _
      $region48: #{tpu_custom_call.1} parent=5 // pred_fallthru
        _
      %p787 = scmp.le.s32.totalorder 2, %s21
      // Predicated region
      $region69: #{tpu_custom_call.1} parent=5 // pred_check
        %p788 = pneg %p787
      $region70: #{tpu_custom_call.1} parent=5 // pred_check_branch
        %790 = sbr.rel (%p788) target = $region72
      $region71: #{tpu_custom_call.1} parent=5 // pred_region
        %s791 = ssub.s32 %s21, 2
        // Predicated region
        $region73: #{tpu_custom_call.1} parent=71 // pred_check
          %p792 = pneg %p248
        $region74: #{tpu_custom_call.1} parent=71 // pred_check_branch
          %794 = sbr.rel (%p792) target = $region76
        $region75: #{tpu_custom_call.1} parent=71 // pred_region
          %s795 = sand.u32 %s233, 1
          %s796 = scalar_lea.sflag [#allocation4], %s795
          %s797 = sand.u32 %s233, 1
          %s798 = smul.addr %s797, 8
          %s799 = scalar_lea.vmem [#allocation10], %s798
          %800 = dma.done %s796, 128
        $region76: #{tpu_custom_call.1} parent=71 // pred_fallthru
          _
      $region72: #{tpu_custom_call.1} parent=5 // pred_fallthru
        _
    $region6: #{tpu_custom_call.1} parent=1 // loop_footer
      %s25 = sadd.s32 1, %s21
    $region7: #{tpu_custom_call.1} parent=1 // loop_footer_branch
      %20 = sbr.rel target = $region3
    $region8: #{tpu_custom_call.1} parent=1 // loop_exit
      _
    %801 = vsyncpa [#allocation3], 1
    %s802 = scalar_lea.sflag [#allocation3], 1
    %803 = vsyncpa %s802, 1
    %804 = vsyncpa [#allocation6], 1
    %805 = vsyncpa [#allocation9], 1
    %806 = vsyncpa [#allocation4], 1
    %s807 = scalar_lea.sflag [#allocation4], 1
    %808 = vsyncpa %s807, 1

</llo_original>
